<compile_context>
chip_gen: v6e
topology: v6e:2x2x1
jax: 0.10.0
libtpu: 0.0.40
codegen_flags: <defaults>
</compile_context>

<pallas_src>
import functools

import jax
import jax.numpy as jnp
from jax.experimental import pallas as pl
from jax.experimental.pallas import tpu as pltpu


def _ca_sa_kernel(saw_ref, rgb_ref, depth_ref, w1r_ref, w1d_ref, w2_ref, out_ref, *, W):
    """One batch block.

    saw_ref : (49,) f32 in SMEM (scalar-prefetched 7x7 spatial-conv weights)
    rgb_ref / depth_ref / out_ref : (Bblk, Ch, H*W)  channels on sublanes, spatial on lanes
    w1r_ref / w1d_ref / w2_ref    : (Cmid, Ch, 1)    fc weights, channels on sublanes
    """
    f32 = jnp.float32
    rgb = rgb_ref[...].astype(f32)
    depth = depth_ref[...].astype(f32)
    bblk, ch, hw = depth.shape
    cmid = w1r_ref.shape[0]

    # ---------------- CA_Enhance ----------------
    # Global spatial max pool (lane reduce; keepdims keeps channels on sublanes).
    mr = jnp.max(rgb, axis=-1, keepdims=True)         # (Bblk, Ch, 1)
    md = jnp.max(depth, axis=-1, keepdims=True)       # (Bblk, Ch, 1)

    # fc1 -> ReLU -> fc2 on the VPU (Cmid is tiny).  Channels never leave the
    # sublane axis, so `ca` broadcasts over lanes without any relayout.
    w1r = w1r_ref[...]
    w1d = w1d_ref[...]
    w2 = w2_ref[...]
    o = jnp.zeros((bblk, ch, 1), f32)
    for m in range(cmid):
        hm = jnp.sum(mr * w1r[m] + md * w1d[m], axis=1, keepdims=True)   # (Bblk,1,1)
        hm = jnp.maximum(hm, 0.0)
        o = o + hm * w2[m]                                               # (Bblk,Ch,1)
    ca = jax.nn.sigmoid(o)                                               # (Bblk,Ch,1)

    # ---------------- SA_Enhance ----------------
    # Channel max of the CA-scaled depth (sublane reduce).
    sa_in = jnp.max(depth * ca, axis=1, keepdims=True)                   # (Bblk,1,HW)

    # 7x7 conv, pad=3, on the flattened spatial axis.
    def shift_flat(x, s):
        # y[p] = x[p + s], zero-filled outside [0, hw)
        if s == 0:
            return x
        if abs(s) >= hw:
            return jnp.zeros((bblk, 1, hw), f32)
        if s > 0:
            return jnp.concatenate(
                [x[:, :, s:], jnp.zeros((bblk, 1, s), f32)], axis=2)
        return jnp.concatenate(
            [jnp.zeros((bblk, 1, -s), f32), x[:, :, :hw + s]], axis=2)

    # Stage 1: 7 column shifts with an iota-based column-validity mask
    # (the flat shift would otherwise wrap across image rows).
    col = jax.lax.broadcasted_iota(jnp.int32, (1, 1, hw), 2) % W
    col_shifted = []
    for dj in range(7):
        d = dj - 3
        ok = (col + d >= 0) & (col + d < W)
        col_shifted.append(jnp.where(ok, shift_flat(sa_in, d), 0.0))

    # Stage 2: per kernel row, weighted combine of the 7 column-shifted maps
    # (scalar weights read from SMEM) followed by ONE row shift.  Row
    # out-of-range taps are handled exactly by the zero fill of the flat shift.
    acc = jnp.zeros((bblk, 1, hw), f32)
    for di in range(7):
        comb = col_shifted[0] * saw_ref[di * 7 + 0]
        for dj in range(1, 7):
            comb = comb + col_shifted[dj] * saw_ref[di * 7 + dj]
        acc = acc + shift_flat(comb, (di - 3) * W)

    sa = jax.nn.sigmoid(acc)                                             # (Bblk,1,HW)

    # depth_enhance = (original) depth * sa, broadcast over channels (sublanes).
    out_ref[...] = (depth * sa).astype(out_ref.dtype)


def ca_sa_enhance(rgb_nchw, depth_nchw, fc1_w, fc2_w, sa_w, *, b_block=None):
    """rgb/depth: (B, Ch, H, W) with Ch = in_planes // 2.
       fc1_w: (in_planes//16, in_planes), fc2_w: (in_planes//2, in_planes//16), sa_w: (7, 7)."""
    B, Ch, H, W = depth_nchw.shape
    HW = H * W
    Cmid = fc1_w.shape[0]
    assert fc1_w.shape == (Cmid, 2 * Ch) and fc2_w.shape == (Ch, Cmid) and sa_w.shape == (7, 7)

    # Lane-dense view of NCHW: (B, Ch, H*W).  Pure metadata reshape, no transpose.
    rgb = rgb_nchw.reshape(B, Ch, HW)
    depth = depth_nchw.reshape(B, Ch, HW)

    f32 = jnp.float32
    w1 = fc1_w.astype(f32)                            # concat order in the module is [rgb, depth]
    w1r = w1[:, :Ch].reshape(Cmid, Ch, 1)
    w1d = w1[:, Ch:].reshape(Cmid, Ch, 1)
    w2c = fc2_w.astype(f32).T.reshape(Cmid, Ch, 1)    # w2c[m, n, 0] = fc2_w[n, m]
    saw = sa_w.astype(f32).reshape(49)

    if b_block is None:
        # Target a few MiB of input per grid step (amortizes the ~0.35us step
        # overhead) but keep >= 2 steps when possible so the "parallel" axis
        # can be sharded across TensorCores.  Double-buffered in+out stays well
        # under the default scoped-VMEM limit.
        per_image = 2 * Ch * HW * depth_nchw.dtype.itemsize
        cap = max(1, min((4 << 20) // max(per_image, 1), max(1, B // 2)))
        b_block = next(bb for bb in range(min(B, cap), 0, -1) if B % bb == 0)
    nb = B // b_block

    grid_spec = pltpu.PrefetchScalarGridSpec(
        num_scalar_prefetch=1,                        # sa_w (49,) lands in SMEM
        grid=(nb,),
        in_specs=[
            pl.BlockSpec((b_block, Ch, HW), lambda i, sw: (i, 0, 0)),   # rgb
            pl.BlockSpec((b_block, Ch, HW), lambda i, sw: (i, 0, 0)),   # depth
            pl.BlockSpec((Cmid, Ch, 1), lambda i, sw: (0, 0, 0)),       # fc1 (rgb half)
            pl.BlockSpec((Cmid, Ch, 1), lambda i, sw: (0, 0, 0)),       # fc1 (depth half)
            pl.BlockSpec((Cmid, Ch, 1), lambda i, sw: (0, 0, 0)),       # fc2 (transposed)
        ],
        out_specs=pl.BlockSpec((b_block, Ch, HW), lambda i, sw: (i, 0, 0)),
    )

    out = pl.pallas_call(
        functools.partial(_ca_sa_kernel, W=W),
        out_shape=jax.ShapeDtypeStruct((B, Ch, HW), depth_nchw.dtype),
        grid_spec=grid_spec,
        compiler_params=pltpu.CompilerParams(dimension_semantics=("parallel",)),
    )(saw, rgb, depth, w1r, w1d, w2c)

    return out.reshape(B, Ch, H, W)


def _reference(rgb, depth, fc1_w, fc2_w, sa_w):
    """Plain-JAX reference mirroring the PyTorch module (NCHW)."""
    x = jnp.concatenate([rgb, depth], axis=1)
    mp = jnp.max(x, axis=(2, 3), keepdims=True)                          # (B, C, 1, 1)
    h = jnp.maximum(jnp.einsum('mc,bcij->bmij', fc1_w, mp), 0.0)
    o = jnp.einsum('nm,bmij->bnij', fc2_w, h)
    ca = jax.nn.sigmoid(o)
    x_d = depth * ca
    sa_in = jnp.max(x_d, axis=1, keepdims=True)                          # (B, 1, H, W)
    conv = jax.lax.conv_general_dilated(
        sa_in, sa_w.reshape(1, 1, 7, 7), window_strides=(1, 1),
        padding=((3, 3), (3, 3)), dimension_numbers=('NCHW', 'OIHW', 'NCHW'))
    sa = jax.nn.sigmoid(conv)
    return depth * sa


if __name__ == "__main__":
    # in_planes = 32  ->  rgb/depth each have in_planes // 2 = 16 channels
    B, Ch, H, W = 2, 16, 16, 16
    in_planes = 2 * Ch
    Cmid = in_planes // 16

    key = jax.random.PRNGKey(0)
    k1, k2, k3, k4, k5 = jax.random.split(key, 5)
    rgb = jax.random.normal(k1, (B, Ch, H, W), jnp.float32)
    depth = jax.random.normal(k2, (B, Ch, H, W), jnp.float32)
    fc1_w = 0.1 * jax.random.normal(k3, (Cmid, in_planes), jnp.float32)      # Conv2d(in_planes, in_planes//16, 1)
    fc2_w = 0.1 * jax.random.normal(k4, (in_planes // 2, Cmid), jnp.float32) # Conv2d(in_planes//16, in_planes//2, 1)
    sa_w = 0.1 * jax.random.normal(k5, (7, 7), jnp.float32)                  # Conv2d(1, 1, 7, padding=3)

    out = ca_sa_enhance(rgb, depth, fc1_w, fc2_w, sa_w)
    out = jax.block_until_ready(out)

    ref = _reference(rgb, depth, fc1_w, fc2_w, sa_w)
    assert out.shape == ref.shape == (B, Ch, H, W)
    assert jnp.allclose(out, ref, atol=1e-4, rtol=1e-4), float(jnp.max(jnp.abs(out - ref)))
    print("KERNEL_OK")
</pallas_src>

<mosaic_0001>
module attributes {stable_mosaic.version = 11 : i64} {
  func.func @_ca_sa_kernel(%arg0: i32, %arg1: memref<49xf32, #tpu.memory_space<smem>>, %arg2: memref<1x16x256xf32, #tpu.memory_space<vmem>>, %arg3: memref<1x16x256xf32, #tpu.memory_space<vmem>>, %arg4: memref<2x16x1xf32, #tpu.memory_space<vmem>>, %arg5: memref<2x16x1xf32, #tpu.memory_space<vmem>>, %arg6: memref<2x16x1xf32, #tpu.memory_space<vmem>>, %arg7: memref<1x16x256xf32, #tpu.memory_space<vmem>>) attributes {dimension_semantics = [#tpu.dimension_semantics<parallel>], iteration_bounds = array<i64: 2>, scalar_prefetch = 1 : i64, scratch_operands = 0 : i64, tpu.core_type = #tpu.core_type<tc>, window_params = [{transform_indices = @transform_0, window_bounds = array<i64: 1, 16, 256>}, {transform_indices = @transform_1, window_bounds = array<i64: 1, 16, 256>}, {pipeline_mode = #tpu.pipeline_mode<synchronous>, transform_indices = @transform_2, window_bounds = array<i64: 2, 16, 1>}, {pipeline_mode = #tpu.pipeline_mode<synchronous>, transform_indices = @transform_3, window_bounds = array<i64: 2, 16, 1>}, {pipeline_mode = #tpu.pipeline_mode<synchronous>, transform_indices = @transform_4, window_bounds = array<i64: 2, 16, 1>}, {transform_indices = @transform_5, window_bounds = array<i64: 1, 16, 256>}]} {
    %c0 = arith.constant 0 : index
    %c0_0 = arith.constant 0 : index
    %c0_1 = arith.constant 0 : index
    %0 = vector.load %arg2[%c0, %c0_0, %c0_1] : memref<1x16x256xf32, #tpu.memory_space<vmem>>, vector<1x16x256xf32>
    %c0_2 = arith.constant 0 : index
    %c0_3 = arith.constant 0 : index
    %c0_4 = arith.constant 0 : index
    %1 = vector.load %arg3[%c0_2, %c0_3, %c0_4] : memref<1x16x256xf32, #tpu.memory_space<vmem>>, vector<1x16x256xf32>
    %cst = arith.constant dense<0xFF800000> : vector<1x16xf32>
    %2 = vector.multi_reduction <maximumf>, %0, %cst [2] : vector<1x16x256xf32> to vector<1x16xf32>
    %3 = vector.shape_cast %2 : vector<1x16xf32> to vector<1x16x1xf32>
    %cst_5 = arith.constant dense<0xFF800000> : vector<1x16xf32>
    %4 = vector.multi_reduction <maximumf>, %1, %cst_5 [2] : vector<1x16x256xf32> to vector<1x16xf32>
    %5 = vector.shape_cast %4 : vector<1x16xf32> to vector<1x16x1xf32>
    %c0_6 = arith.constant 0 : index
    %c0_7 = arith.constant 0 : index
    %c0_8 = arith.constant 0 : index
    %6 = vector.load %arg4[%c0_6, %c0_7, %c0_8] : memref<2x16x1xf32, #tpu.memory_space<vmem>>, vector<2x16x1xf32>
    %c0_9 = arith.constant 0 : index
    %c0_10 = arith.constant 0 : index
    %c0_11 = arith.constant 0 : index
    %7 = vector.load %arg5[%c0_9, %c0_10, %c0_11] : memref<2x16x1xf32, #tpu.memory_space<vmem>>, vector<2x16x1xf32>
    %c0_12 = arith.constant 0 : index
    %c0_13 = arith.constant 0 : index
    %c0_14 = arith.constant 0 : index
    %8 = vector.load %arg6[%c0_12, %c0_13, %c0_14] : memref<2x16x1xf32, #tpu.memory_space<vmem>>, vector<2x16x1xf32>
    %cst_15 = arith.constant 0.000000e+00 : f32
    %9 = vector.broadcast %cst_15 : f32 to vector<1x16x1xf32>
    %10 = vector.extract_strided_slice %6 {offsets = [0, 0, 0], sizes = [1, 16, 1], strides = [1, 1, 1]} : vector<2x16x1xf32> to vector<1x16x1xf32>
    %11 = vector.shape_cast %10 : vector<1x16x1xf32> to vector<16x1xf32>
    %12 = vector.shape_cast %11 : vector<16x1xf32> to vector<1x16x1xf32>
    %13 = arith.mulf %3, %12 : vector<1x16x1xf32>
    %14 = vector.extract_strided_slice %7 {offsets = [0, 0, 0], sizes = [1, 16, 1], strides = [1, 1, 1]} : vector<2x16x1xf32> to vector<1x16x1xf32>
    %15 = vector.shape_cast %14 : vector<1x16x1xf32> to vector<16x1xf32>
    %16 = vector.shape_cast %15 : vector<16x1xf32> to vector<1x16x1xf32>
    %17 = arith.mulf %5, %16 : vector<1x16x1xf32>
    %18 = arith.addf %13, %17 : vector<1x16x1xf32>
    %cst_16 = arith.constant dense<0.000000e+00> : vector<1x1xf32>
    %19 = vector.multi_reduction <add>, %18, %cst_16 [1] : vector<1x16x1xf32> to vector<1x1xf32>
    %20 = vector.shape_cast %19 : vector<1x1xf32> to vector<1x1x1xf32>
    %cst_17 = arith.constant 0.000000e+00 : f32
    %21 = vector.broadcast %cst_17 : f32 to vector<1x1x1xf32>
    %22 = arith.maximumf %20, %21 : vector<1x1x1xf32>
    %23 = vector.extract_strided_slice %8 {offsets = [0, 0, 0], sizes = [1, 16, 1], strides = [1, 1, 1]} : vector<2x16x1xf32> to vector<1x16x1xf32>
    %24 = vector.shape_cast %23 : vector<1x16x1xf32> to vector<16x1xf32>
    %25 = vector.shape_cast %24 : vector<16x1xf32> to vector<1x16x1xf32>
    %26 = vector.broadcast %22 : vector<1x1x1xf32> to vector<1x16x1xf32>
    %27 = arith.mulf %26, %25 : vector<1x16x1xf32>
    %28 = arith.addf %9, %27 : vector<1x16x1xf32>
    %29 = vector.extract_strided_slice %6 {offsets = [1, 0, 0], sizes = [1, 16, 1], strides = [1, 1, 1]} : vector<2x16x1xf32> to vector<1x16x1xf32>
    %30 = vector.shape_cast %29 : vector<1x16x1xf32> to vector<16x1xf32>
    %31 = vector.shape_cast %30 : vector<16x1xf32> to vector<1x16x1xf32>
    %32 = arith.mulf %3, %31 : vector<1x16x1xf32>
    %33 = vector.extract_strided_slice %7 {offsets = [1, 0, 0], sizes = [1, 16, 1], strides = [1, 1, 1]} : vector<2x16x1xf32> to vector<1x16x1xf32>
    %34 = vector.shape_cast %33 : vector<1x16x1xf32> to vector<16x1xf32>
    %35 = vector.shape_cast %34 : vector<16x1xf32> to vector<1x16x1xf32>
    %36 = arith.mulf %5, %35 : vector<1x16x1xf32>
    %37 = arith.addf %32, %36 : vector<1x16x1xf32>
    %cst_18 = arith.constant dense<0.000000e+00> : vector<1x1xf32>
    %38 = vector.multi_reduction <add>, %37, %cst_18 [1] : vector<1x16x1xf32> to vector<1x1xf32>
    %39 = vector.shape_cast %38 : vector<1x1xf32> to vector<1x1x1xf32>
    %cst_19 = arith.constant 0.000000e+00 : f32
    %40 = vector.broadcast %cst_19 : f32 to vector<1x1x1xf32>
    %41 = arith.maximumf %39, %40 : vector<1x1x1xf32>
    %42 = vector.extract_strided_slice %8 {offsets = [1, 0, 0], sizes = [1, 16, 1], strides = [1, 1, 1]} : vector<2x16x1xf32> to vector<1x16x1xf32>
    %43 = vector.shape_cast %42 : vector<1x16x1xf32> to vector<16x1xf32>
    %44 = vector.shape_cast %43 : vector<16x1xf32> to vector<1x16x1xf32>
    %45 = vector.broadcast %41 : vector<1x1x1xf32> to vector<1x16x1xf32>
    %46 = arith.mulf %45, %44 : vector<1x16x1xf32>
    %47 = arith.addf %28, %46 : vector<1x16x1xf32>
    %48 = arith.negf %47 : vector<1x16x1xf32>
    %49 = math.exp %48 : vector<1x16x1xf32>
    %cst_20 = arith.constant 1.000000e+00 : f32
    %50 = vector.broadcast %cst_20 : f32 to vector<1x16x1xf32>
    %51 = arith.addf %50, %49 : vector<1x16x1xf32>
    %52 = arith.divf %50, %51 : vector<1x16x1xf32>
    %53 = vector.broadcast %52 : vector<1x16x1xf32> to vector<1x16x256xf32>
    %54 = arith.mulf %1, %53 : vector<1x16x256xf32>
    %cst_21 = arith.constant dense<0xFF800000> : vector<1x256xf32>
    %55 = vector.multi_reduction <maximumf>, %54, %cst_21 [1] : vector<1x16x256xf32> to vector<1x256xf32>
    %56 = vector.shape_cast %55 : vector<1x256xf32> to vector<1x1x256xf32>
    %57 = tpu.iota {dimensions = array<i32: 2>} : vector<1x1x256xi32>
    %c16_i32 = arith.constant 16 : i32
    %c0_i32 = arith.constant 0 : i32
    %58 = arith.cmpi eq, %c16_i32, %c0_i32 : i32
    %c1_i32 = arith.constant 1 : i32
    %59 = arith.select %58, %c1_i32, %c16_i32 : i32
    %60 = vector.broadcast %59 : i32 to vector<1x1x256xi32>
    %61 = arith.remsi %57, %60 : vector<1x1x256xi32>
    %c0_i32_22 = arith.constant 0 : i32
    %62 = vector.broadcast %c0_i32_22 : i32 to vector<1x1x256xi32>
    %63 = arith.cmpi ne, %61, %62 : vector<1x1x256xi32>
    %c0_i32_23 = arith.constant 0 : i32
    %64 = vector.broadcast %c0_i32_23 : i32 to vector<1x1x256xi32>
    %65 = arith.cmpi slt, %61, %64 : vector<1x1x256xi32>
    %c0_i32_24 = arith.constant 0 : i32
    %66 = arith.cmpi slt, %59, %c0_i32_24 : i32
    %67 = vector.broadcast %66 : i1 to vector<1x1x256xi1>
    %68 = vector.broadcast %67 : vector<1x1x256xi1> to vector<1x1x256xi1>
    %69 = arith.xori %65, %68 : vector<1x1x256xi1>
    %70 = arith.andi %69, %63 : vector<1x1x256xi1>
    %71 = vector.broadcast %59 : i32 to vector<1x1x256xi32>
    %72 = arith.addi %61, %71 : vector<1x1x256xi32>
    %73 = arith.select %70, %72, %61 : vector<1x1x256xi1>, vector<1x1x256xi32>
    %c-3_i32 = arith.constant -3 : i32
    %74 = vector.broadcast %c-3_i32 : i32 to vector<1x1x256xi32>
    %75 = arith.addi %73, %74 : vector<1x1x256xi32>
    %c0_i32_25 = arith.constant 0 : i32
    %76 = vector.broadcast %c0_i32_25 : i32 to vector<1x1x256xi32>
    %77 = arith.cmpi sge, %75, %76 : vector<1x1x256xi32>
    %c-3_i32_26 = arith.constant -3 : i32
    %78 = vector.broadcast %c-3_i32_26 : i32 to vector<1x1x256xi32>
    %79 = arith.addi %73, %78 : vector<1x1x256xi32>
    %c16_i32_27 = arith.constant 16 : i32
    %80 = vector.broadcast %c16_i32_27 : i32 to vector<1x1x256xi32>
    %81 = arith.cmpi slt, %79, %80 : vector<1x1x256xi32>
    %82 = arith.andi %77, %81 : vector<1x1x256xi1>
    %cst_28 = arith.constant 0.000000e+00 : f32
    %83 = vector.broadcast %cst_28 : f32 to vector<1x1x3xf32>
    %84 = vector.extract_strided_slice %56 {offsets = [0, 0, 0], sizes = [1, 1, 253], strides = [1, 1, 1]} : vector<1x1x256xf32> to vector<1x1x253xf32>
    %85 = tpu.concatenate %83, %84 in 2 : vector<1x1x3xf32>, vector<1x1x253xf32> -> vector<1x1x256xf32>
    %cst_29 = arith.constant 0.000000e+00 : f32
    %86 = vector.broadcast %cst_29 : f32 to vector<1x1x256xf32>
    %87 = arith.select %82, %85, %86 : vector<1x1x256xi1>, vector<1x1x256xf32>
    %c-2_i32 = arith.constant -2 : i32
    %88 = vector.broadcast %c-2_i32 : i32 to vector<1x1x256xi32>
    %89 = arith.addi %73, %88 : vector<1x1x256xi32>
    %c0_i32_30 = arith.constant 0 : i32
    %90 = vector.broadcast %c0_i32_30 : i32 to vector<1x1x256xi32>
    %91 = arith.cmpi sge, %89, %90 : vector<1x1x256xi32>
    %c-2_i32_31 = arith.constant -2 : i32
    %92 = vector.broadcast %c-2_i32_31 : i32 to vector<1x1x256xi32>
    %93 = arith.addi %73, %92 : vector<1x1x256xi32>
    %c16_i32_32 = arith.constant 16 : i32
    %94 = vector.broadcast %c16_i32_32 : i32 to vector<1x1x256xi32>
    %95 = arith.cmpi slt, %93, %94 : vector<1x1x256xi32>
    %96 = arith.andi %91, %95 : vector<1x1x256xi1>
    %cst_33 = arith.constant 0.000000e+00 : f32
    %97 = vector.broadcast %cst_33 : f32 to vector<1x1x2xf32>
    %98 = vector.extract_strided_slice %56 {offsets = [0, 0, 0], sizes = [1, 1, 254], strides = [1, 1, 1]} : vector<1x1x256xf32> to vector<1x1x254xf32>
    %99 = tpu.concatenate %97, %98 in 2 : vector<1x1x2xf32>, vector<1x1x254xf32> -> vector<1x1x256xf32>
    %cst_34 = arith.constant 0.000000e+00 : f32
    %100 = vector.broadcast %cst_34 : f32 to vector<1x1x256xf32>
    %101 = arith.select %96, %99, %100 : vector<1x1x256xi1>, vector<1x1x256xf32>
    %c-1_i32 = arith.constant -1 : i32
    %102 = vector.broadcast %c-1_i32 : i32 to vector<1x1x256xi32>
    %103 = arith.addi %73, %102 : vector<1x1x256xi32>
    %c0_i32_35 = arith.constant 0 : i32
    %104 = vector.broadcast %c0_i32_35 : i32 to vector<1x1x256xi32>
    %105 = arith.cmpi sge, %103, %104 : vector<1x1x256xi32>
    %c-1_i32_36 = arith.constant -1 : i32
    %106 = vector.broadcast %c-1_i32_36 : i32 to vector<1x1x256xi32>
    %107 = arith.addi %73, %106 : vector<1x1x256xi32>
    %c16_i32_37 = arith.constant 16 : i32
    %108 = vector.broadcast %c16_i32_37 : i32 to vector<1x1x256xi32>
    %109 = arith.cmpi slt, %107, %108 : vector<1x1x256xi32>
    %110 = arith.andi %105, %109 : vector<1x1x256xi1>
    %cst_38 = arith.constant 0.000000e+00 : f32
    %111 = vector.broadcast %cst_38 : f32 to vector<1x1x1xf32>
    %112 = vector.extract_strided_slice %56 {offsets = [0, 0, 0], sizes = [1, 1, 255], strides = [1, 1, 1]} : vector<1x1x256xf32> to vector<1x1x255xf32>
    %113 = tpu.concatenate %111, %112 in 2 : vector<1x1x1xf32>, vector<1x1x255xf32> -> vector<1x1x256xf32>
    %cst_39 = arith.constant 0.000000e+00 : f32
    %114 = vector.broadcast %cst_39 : f32 to vector<1x1x256xf32>
    %115 = arith.select %110, %113, %114 : vector<1x1x256xi1>, vector<1x1x256xf32>
    %c0_i32_40 = arith.constant 0 : i32
    %116 = vector.broadcast %c0_i32_40 : i32 to vector<1x1x256xi32>
    %117 = arith.addi %73, %116 : vector<1x1x256xi32>
    %c0_i32_41 = arith.constant 0 : i32
    %118 = vector.broadcast %c0_i32_41 : i32 to vector<1x1x256xi32>
    %119 = arith.cmpi sge, %117, %118 : vector<1x1x256xi32>
    %c0_i32_42 = arith.constant 0 : i32
    %120 = vector.broadcast %c0_i32_42 : i32 to vector<1x1x256xi32>
    %121 = arith.addi %73, %120 : vector<1x1x256xi32>
    %c16_i32_43 = arith.constant 16 : i32
    %122 = vector.broadcast %c16_i32_43 : i32 to vector<1x1x256xi32>
    %123 = arith.cmpi slt, %121, %122 : vector<1x1x256xi32>
    %124 = arith.andi %119, %123 : vector<1x1x256xi1>
    %cst_44 = arith.constant 0.000000e+00 : f32
    %125 = vector.broadcast %cst_44 : f32 to vector<1x1x256xf32>
    %126 = arith.select %124, %56, %125 : vector<1x1x256xi1>, vector<1x1x256xf32>
    %c1_i32_45 = arith.constant 1 : i32
    %127 = vector.broadcast %c1_i32_45 : i32 to vector<1x1x256xi32>
    %128 = arith.addi %73, %127 : vector<1x1x256xi32>
    %c0_i32_46 = arith.constant 0 : i32
    %129 = vector.broadcast %c0_i32_46 : i32 to vector<1x1x256xi32>
    %130 = arith.cmpi sge, %128, %129 : vector<1x1x256xi32>
    %c1_i32_47 = arith.constant 1 : i32
    %131 = vector.broadcast %c1_i32_47 : i32 to vector<1x1x256xi32>
    %132 = arith.addi %73, %131 : vector<1x1x256xi32>
    %c16_i32_48 = arith.constant 16 : i32
    %133 = vector.broadcast %c16_i32_48 : i32 to vector<1x1x256xi32>
    %134 = arith.cmpi slt, %132, %133 : vector<1x1x256xi32>
    %135 = arith.andi %130, %134 : vector<1x1x256xi1>
    %136 = vector.extract_strided_slice %56 {offsets = [0, 0, 1], sizes = [1, 1, 255], strides = [1, 1, 1]} : vector<1x1x256xf32> to vector<1x1x255xf32>
    %cst_49 = arith.constant 0.000000e+00 : f32
    %137 = vector.broadcast %cst_49 : f32 to vector<1x1x1xf32>
    %138 = tpu.concatenate %136, %137 in 2 : vector<1x1x255xf32>, vector<1x1x1xf32> -> vector<1x1x256xf32>
    %cst_50 = arith.constant 0.000000e+00 : f32
    %139 = vector.broadcast %cst_50 : f32 to vector<1x1x256xf32>
    %140 = arith.select %135, %138, %139 : vector<1x1x256xi1>, vector<1x1x256xf32>
    %c2_i32 = arith.constant 2 : i32
    %141 = vector.broadcast %c2_i32 : i32 to vector<1x1x256xi32>
    %142 = arith.addi %73, %141 : vector<1x1x256xi32>
    %c0_i32_51 = arith.constant 0 : i32
    %143 = vector.broadcast %c0_i32_51 : i32 to vector<1x1x256xi32>
    %144 = arith.cmpi sge, %142, %143 : vector<1x1x256xi32>
    %c2_i32_52 = arith.constant 2 : i32
    %145 = vector.broadcast %c2_i32_52 : i32 to vector<1x1x256xi32>
    %146 = arith.addi %73, %145 : vector<1x1x256xi32>
    %c16_i32_53 = arith.constant 16 : i32
    %147 = vector.broadcast %c16_i32_53 : i32 to vector<1x1x256xi32>
    %148 = arith.cmpi slt, %146, %147 : vector<1x1x256xi32>
    %149 = arith.andi %144, %148 : vector<1x1x256xi1>
    %150 = vector.extract_strided_slice %56 {offsets = [0, 0, 2], sizes = [1, 1, 254], strides = [1, 1, 1]} : vector<1x1x256xf32> to vector<1x1x254xf32>
    %cst_54 = arith.constant 0.000000e+00 : f32
    %151 = vector.broadcast %cst_54 : f32 to vector<1x1x2xf32>
    %152 = tpu.concatenate %150, %151 in 2 : vector<1x1x254xf32>, vector<1x1x2xf32> -> vector<1x1x256xf32>
    %cst_55 = arith.constant 0.000000e+00 : f32
    %153 = vector.broadcast %cst_55 : f32 to vector<1x1x256xf32>
    %154 = arith.select %149, %152, %153 : vector<1x1x256xi1>, vector<1x1x256xf32>
    %c3_i32 = arith.constant 3 : i32
    %155 = vector.broadcast %c3_i32 : i32 to vector<1x1x256xi32>
    %156 = arith.addi %73, %155 : vector<1x1x256xi32>
    %c0_i32_56 = arith.constant 0 : i32
    %157 = vector.broadcast %c0_i32_56 : i32 to vector<1x1x256xi32>
    %158 = arith.cmpi sge, %156, %157 : vector<1x1x256xi32>
    %c3_i32_57 = arith.constant 3 : i32
    %159 = vector.broadcast %c3_i32_57 : i32 to vector<1x1x256xi32>
    %160 = arith.addi %73, %159 : vector<1x1x256xi32>
    %c16_i32_58 = arith.constant 16 : i32
    %161 = vector.broadcast %c16_i32_58 : i32 to vector<1x1x256xi32>
    %162 = arith.cmpi slt, %160, %161 : vector<1x1x256xi32>
    %163 = arith.andi %158, %162 : vector<1x1x256xi1>
    %164 = vector.extract_strided_slice %56 {offsets = [0, 0, 3], sizes = [1, 1, 253], strides = [1, 1, 1]} : vector<1x1x256xf32> to vector<1x1x253xf32>
    %cst_59 = arith.constant 0.000000e+00 : f32
    %165 = vector.broadcast %cst_59 : f32 to vector<1x1x3xf32>
    %166 = tpu.concatenate %164, %165 in 2 : vector<1x1x253xf32>, vector<1x1x3xf32> -> vector<1x1x256xf32>
    %cst_60 = arith.constant 0.000000e+00 : f32
    %167 = vector.broadcast %cst_60 : f32 to vector<1x1x256xf32>
    %168 = arith.select %163, %166, %167 : vector<1x1x256xi1>, vector<1x1x256xf32>
    %cst_61 = arith.constant 0.000000e+00 : f32
    %169 = vector.broadcast %cst_61 : f32 to vector<1x1x256xf32>
    %c0_62 = arith.constant 0 : index
    %170 = memref.load %arg1[%c0_62] : memref<49xf32, #tpu.memory_space<smem>>
    %171 = vector.broadcast %170 : f32 to vector<1x1x256xf32>
    %172 = arith.mulf %87, %171 : vector<1x1x256xf32>
    %c1 = arith.constant 1 : index
    %173 = memref.load %arg1[%c1] : memref<49xf32, #tpu.memory_space<smem>>
    %174 = vector.broadcast %173 : f32 to vector<1x1x256xf32>
    %175 = arith.mulf %101, %174 : vector<1x1x256xf32>
    %176 = arith.addf %172, %175 : vector<1x1x256xf32>
    %c2 = arith.constant 2 : index
    %177 = memref.load %arg1[%c2] : memref<49xf32, #tpu.memory_space<smem>>
    %178 = vector.broadcast %177 : f32 to vector<1x1x256xf32>
    %179 = arith.mulf %115, %178 : vector<1x1x256xf32>
    %180 = arith.addf %176, %179 : vector<1x1x256xf32>
    %c3 = arith.constant 3 : index
    %181 = memref.load %arg1[%c3] : memref<49xf32, #tpu.memory_space<smem>>
    %182 = vector.broadcast %181 : f32 to vector<1x1x256xf32>
    %183 = arith.mulf %126, %182 : vector<1x1x256xf32>
    %184 = arith.addf %180, %183 : vector<1x1x256xf32>
    %c4 = arith.constant 4 : index
    %185 = memref.load %arg1[%c4] : memref<49xf32, #tpu.memory_space<smem>>
    %186 = vector.broadcast %185 : f32 to vector<1x1x256xf32>
    %187 = arith.mulf %140, %186 : vector<1x1x256xf32>
    %188 = arith.addf %184, %187 : vector<1x1x256xf32>
    %c5 = arith.constant 5 : index
    %189 = memref.load %arg1[%c5] : memref<49xf32, #tpu.memory_space<smem>>
    %190 = vector.broadcast %189 : f32 to vector<1x1x256xf32>
    %191 = arith.mulf %154, %190 : vector<1x1x256xf32>
    %192 = arith.addf %188, %191 : vector<1x1x256xf32>
    %c6 = arith.constant 6 : index
    %193 = memref.load %arg1[%c6] : memref<49xf32, #tpu.memory_space<smem>>
    %194 = vector.broadcast %193 : f32 to vector<1x1x256xf32>
    %195 = arith.mulf %168, %194 : vector<1x1x256xf32>
    %196 = arith.addf %192, %195 : vector<1x1x256xf32>
    %cst_63 = arith.constant 0.000000e+00 : f32
    %197 = vector.broadcast %cst_63 : f32 to vector<1x1x48xf32>
    %198 = vector.extract_strided_slice %196 {offsets = [0, 0, 0], sizes = [1, 1, 208], strides = [1, 1, 1]} : vector<1x1x256xf32> to vector<1x1x208xf32>
    %199 = tpu.concatenate %197, %198 in 2 : vector<1x1x48xf32>, vector<1x1x208xf32> -> vector<1x1x256xf32>
    %200 = arith.addf %169, %199 : vector<1x1x256xf32>
    %c7 = arith.constant 7 : index
    %201 = memref.load %arg1[%c7] : memref<49xf32, #tpu.memory_space<smem>>
    %202 = vector.broadcast %201 : f32 to vector<1x1x256xf32>
    %203 = arith.mulf %87, %202 : vector<1x1x256xf32>
    %c8 = arith.constant 8 : index
    %204 = memref.load %arg1[%c8] : memref<49xf32, #tpu.memory_space<smem>>
    %205 = vector.broadcast %204 : f32 to vector<1x1x256xf32>
    %206 = arith.mulf %101, %205 : vector<1x1x256xf32>
    %207 = arith.addf %203, %206 : vector<1x1x256xf32>
    %c9 = arith.constant 9 : index
    %208 = memref.load %arg1[%c9] : memref<49xf32, #tpu.memory_space<smem>>
    %209 = vector.broadcast %208 : f32 to vector<1x1x256xf32>
    %210 = arith.mulf %115, %209 : vector<1x1x256xf32>
    %211 = arith.addf %207, %210 : vector<1x1x256xf32>
    %c10 = arith.constant 10 : index
    %212 = memref.load %arg1[%c10] : memref<49xf32, #tpu.memory_space<smem>>
    %213 = vector.broadcast %212 : f32 to vector<1x1x256xf32>
    %214 = arith.mulf %126, %213 : vector<1x1x256xf32>
    %215 = arith.addf %211, %214 : vector<1x1x256xf32>
    %c11 = arith.constant 11 : index
    %216 = memref.load %arg1[%c11] : memref<49xf32, #tpu.memory_space<smem>>
    %217 = vector.broadcast %216 : f32 to vector<1x1x256xf32>
    %218 = arith.mulf %140, %217 : vector<1x1x256xf32>
    %219 = arith.addf %215, %218 : vector<1x1x256xf32>
    %c12 = arith.constant 12 : index
    %220 = memref.load %arg1[%c12] : memref<49xf32, #tpu.memory_space<smem>>
    %221 = vector.broadcast %220 : f32 to vector<1x1x256xf32>
    %222 = arith.mulf %154, %221 : vector<1x1x256xf32>
    %223 = arith.addf %219, %222 : vector<1x1x256xf32>
    %c13 = arith.constant 13 : index
    %224 = memref.load %arg1[%c13] : memref<49xf32, #tpu.memory_space<smem>>
    %225 = vector.broadcast %224 : f32 to vector<1x1x256xf32>
    %226 = arith.mulf %168, %225 : vector<1x1x256xf32>
    %227 = arith.addf %223, %226 : vector<1x1x256xf32>
    %cst_64 = arith.constant 0.000000e+00 : f32
    %228 = vector.broadcast %cst_64 : f32 to vector<1x1x32xf32>
    %229 = vector.extract_strided_slice %227 {offsets = [0, 0, 0], sizes = [1, 1, 224], strides = [1, 1, 1]} : vector<1x1x256xf32> to vector<1x1x224xf32>
    %230 = tpu.concatenate %228, %229 in 2 : vector<1x1x32xf32>, vector<1x1x224xf32> -> vector<1x1x256xf32>
    %231 = arith.addf %200, %230 : vector<1x1x256xf32>
    %c14 = arith.constant 14 : index
    %232 = memref.load %arg1[%c14] : memref<49xf32, #tpu.memory_space<smem>>
    %233 = vector.broadcast %232 : f32 to vector<1x1x256xf32>
    %234 = arith.mulf %87, %233 : vector<1x1x256xf32>
    %c15 = arith.constant 15 : index
    %235 = memref.load %arg1[%c15] : memref<49xf32, #tpu.memory_space<smem>>
    %236 = vector.broadcast %235 : f32 to vector<1x1x256xf32>
    %237 = arith.mulf %101, %236 : vector<1x1x256xf32>
    %238 = arith.addf %234, %237 : vector<1x1x256xf32>
    %c16 = arith.constant 16 : index
    %239 = memref.load %arg1[%c16] : memref<49xf32, #tpu.memory_space<smem>>
    %240 = vector.broadcast %239 : f32 to vector<1x1x256xf32>
    %241 = arith.mulf %115, %240 : vector<1x1x256xf32>
    %242 = arith.addf %238, %241 : vector<1x1x256xf32>
    %c17 = arith.constant 17 : index
    %243 = memref.load %arg1[%c17] : memref<49xf32, #tpu.memory_space<smem>>
    %244 = vector.broadcast %243 : f32 to vector<1x1x256xf32>
    %245 = arith.mulf %126, %244 : vector<1x1x256xf32>
    %246 = arith.addf %242, %245 : vector<1x1x256xf32>
    %c18 = arith.constant 18 : index
    %247 = memref.load %arg1[%c18] : memref<49xf32, #tpu.memory_space<smem>>
    %248 = vector.broadcast %247 : f32 to vector<1x1x256xf32>
    %249 = arith.mulf %140, %248 : vector<1x1x256xf32>
    %250 = arith.addf %246, %249 : vector<1x1x256xf32>
    %c19 = arith.constant 19 : index
    %251 = memref.load %arg1[%c19] : memref<49xf32, #tpu.memory_space<smem>>
    %252 = vector.broadcast %251 : f32 to vector<1x1x256xf32>
    %253 = arith.mulf %154, %252 : vector<1x1x256xf32>
    %254 = arith.addf %250, %253 : vector<1x1x256xf32>
    %c20 = arith.constant 20 : index
    %255 = memref.load %arg1[%c20] : memref<49xf32, #tpu.memory_space<smem>>
    %256 = vector.broadcast %255 : f32 to vector<1x1x256xf32>
    %257 = arith.mulf %168, %256 : vector<1x1x256xf32>
    %258 = arith.addf %254, %257 : vector<1x1x256xf32>
    %cst_65 = arith.constant 0.000000e+00 : f32
    %259 = vector.broadcast %cst_65 : f32 to vector<1x1x16xf32>
    %260 = vector.extract_strided_slice %258 {offsets = [0, 0, 0], sizes = [1, 1, 240], strides = [1, 1, 1]} : vector<1x1x256xf32> to vector<1x1x240xf32>
    %261 = tpu.concatenate %259, %260 in 2 : vector<1x1x16xf32>, vector<1x1x240xf32> -> vector<1x1x256xf32>
    %262 = arith.addf %231, %261 : vector<1x1x256xf32>
    %c21 = arith.constant 21 : index
    %263 = memref.load %arg1[%c21] : memref<49xf32, #tpu.memory_space<smem>>
    %264 = vector.broadcast %263 : f32 to vector<1x1x256xf32>
    %265 = arith.mulf %87, %264 : vector<1x1x256xf32>
    %c22 = arith.constant 22 : index
    %266 = memref.load %arg1[%c22] : memref<49xf32, #tpu.memory_space<smem>>
    %267 = vector.broadcast %266 : f32 to vector<1x1x256xf32>
    %268 = arith.mulf %101, %267 : vector<1x1x256xf32>
    %269 = arith.addf %265, %268 : vector<1x1x256xf32>
    %c23 = arith.constant 23 : index
    %270 = memref.load %arg1[%c23] : memref<49xf32, #tpu.memory_space<smem>>
    %271 = vector.broadcast %270 : f32 to vector<1x1x256xf32>
    %272 = arith.mulf %115, %271 : vector<1x1x256xf32>
    %273 = arith.addf %269, %272 : vector<1x1x256xf32>
    %c24 = arith.constant 24 : index
    %274 = memref.load %arg1[%c24] : memref<49xf32, #tpu.memory_space<smem>>
    %275 = vector.broadcast %274 : f32 to vector<1x1x256xf32>
    %276 = arith.mulf %126, %275 : vector<1x1x256xf32>
    %277 = arith.addf %273, %276 : vector<1x1x256xf32>
    %c25 = arith.constant 25 : index
    %278 = memref.load %arg1[%c25] : memref<49xf32, #tpu.memory_space<smem>>
    %279 = vector.broadcast %278 : f32 to vector<1x1x256xf32>
    %280 = arith.mulf %140, %279 : vector<1x1x256xf32>
    %281 = arith.addf %277, %280 : vector<1x1x256xf32>
    %c26 = arith.constant 26 : index
    %282 = memref.load %arg1[%c26] : memref<49xf32, #tpu.memory_space<smem>>
    %283 = vector.broadcast %282 : f32 to vector<1x1x256xf32>
    %284 = arith.mulf %154, %283 : vector<1x1x256xf32>
    %285 = arith.addf %281, %284 : vector<1x1x256xf32>
    %c27 = arith.constant 27 : index
    %286 = memref.load %arg1[%c27] : memref<49xf32, #tpu.memory_space<smem>>
    %287 = vector.broadcast %286 : f32 to vector<1x1x256xf32>
    %288 = arith.mulf %168, %287 : vector<1x1x256xf32>
    %289 = arith.addf %285, %288 : vector<1x1x256xf32>
    %290 = arith.addf %262, %289 : vector<1x1x256xf32>
    %c28 = arith.constant 28 : index
    %291 = memref.load %arg1[%c28] : memref<49xf32, #tpu.memory_space<smem>>
    %292 = vector.broadcast %291 : f32 to vector<1x1x256xf32>
    %293 = arith.mulf %87, %292 : vector<1x1x256xf32>
    %c29 = arith.constant 29 : index
    %294 = memref.load %arg1[%c29] : memref<49xf32, #tpu.memory_space<smem>>
    %295 = vector.broadcast %294 : f32 to vector<1x1x256xf32>
    %296 = arith.mulf %101, %295 : vector<1x1x256xf32>
    %297 = arith.addf %293, %296 : vector<1x1x256xf32>
    %c30 = arith.constant 30 : index
    %298 = memref.load %arg1[%c30] : memref<49xf32, #tpu.memory_space<smem>>
    %299 = vector.broadcast %298 : f32 to vector<1x1x256xf32>
    %300 = arith.mulf %115, %299 : vector<1x1x256xf32>
    %301 = arith.addf %297, %300 : vector<1x1x256xf32>
    %c31 = arith.constant 31 : index
    %302 = memref.load %arg1[%c31] : memref<49xf32, #tpu.memory_space<smem>>
    %303 = vector.broadcast %302 : f32 to vector<1x1x256xf32>
    %304 = arith.mulf %126, %303 : vector<1x1x256xf32>
    %305 = arith.addf %301, %304 : vector<1x1x256xf32>
    %c32 = arith.constant 32 : index
    %306 = memref.load %arg1[%c32] : memref<49xf32, #tpu.memory_space<smem>>
    %307 = vector.broadcast %306 : f32 to vector<1x1x256xf32>
    %308 = arith.mulf %140, %307 : vector<1x1x256xf32>
    %309 = arith.addf %305, %308 : vector<1x1x256xf32>
    %c33 = arith.constant 33 : index
    %310 = memref.load %arg1[%c33] : memref<49xf32, #tpu.memory_space<smem>>
    %311 = vector.broadcast %310 : f32 to vector<1x1x256xf32>
    %312 = arith.mulf %154, %311 : vector<1x1x256xf32>
    %313 = arith.addf %309, %312 : vector<1x1x256xf32>
    %c34 = arith.constant 34 : index
    %314 = memref.load %arg1[%c34] : memref<49xf32, #tpu.memory_space<smem>>
    %315 = vector.broadcast %314 : f32 to vector<1x1x256xf32>
    %316 = arith.mulf %168, %315 : vector<1x1x256xf32>
    %317 = arith.addf %313, %316 : vector<1x1x256xf32>
    %318 = vector.extract_strided_slice %317 {offsets = [0, 0, 16], sizes = [1, 1, 240], strides = [1, 1, 1]} : vector<1x1x256xf32> to vector<1x1x240xf32>
    %cst_66 = arith.constant 0.000000e+00 : f32
    %319 = vector.broadcast %cst_66 : f32 to vector<1x1x16xf32>
    %320 = tpu.concatenate %318, %319 in 2 : vector<1x1x240xf32>, vector<1x1x16xf32> -> vector<1x1x256xf32>
    %321 = arith.addf %290, %320 : vector<1x1x256xf32>
    %c35 = arith.constant 35 : index
    %322 = memref.load %arg1[%c35] : memref<49xf32, #tpu.memory_space<smem>>
    %323 = vector.broadcast %322 : f32 to vector<1x1x256xf32>
    %324 = arith.mulf %87, %323 : vector<1x1x256xf32>
    %c36 = arith.constant 36 : index
    %325 = memref.load %arg1[%c36] : memref<49xf32, #tpu.memory_space<smem>>
    %326 = vector.broadcast %325 : f32 to vector<1x1x256xf32>
    %327 = arith.mulf %101, %326 : vector<1x1x256xf32>
    %328 = arith.addf %324, %327 : vector<1x1x256xf32>
    %c37 = arith.constant 37 : index
    %329 = memref.load %arg1[%c37] : memref<49xf32, #tpu.memory_space<smem>>
    %330 = vector.broadcast %329 : f32 to vector<1x1x256xf32>
    %331 = arith.mulf %115, %330 : vector<1x1x256xf32>
    %332 = arith.addf %328, %331 : vector<1x1x256xf32>
    %c38 = arith.constant 38 : index
    %333 = memref.load %arg1[%c38] : memref<49xf32, #tpu.memory_space<smem>>
    %334 = vector.broadcast %333 : f32 to vector<1x1x256xf32>
    %335 = arith.mulf %126, %334 : vector<1x1x256xf32>
    %336 = arith.addf %332, %335 : vector<1x1x256xf32>
    %c39 = arith.constant 39 : index
    %337 = memref.load %arg1[%c39] : memref<49xf32, #tpu.memory_space<smem>>
    %338 = vector.broadcast %337 : f32 to vector<1x1x256xf32>
    %339 = arith.mulf %140, %338 : vector<1x1x256xf32>
    %340 = arith.addf %336, %339 : vector<1x1x256xf32>
    %c40 = arith.constant 40 : index
    %341 = memref.load %arg1[%c40] : memref<49xf32, #tpu.memory_space<smem>>
    %342 = vector.broadcast %341 : f32 to vector<1x1x256xf32>
    %343 = arith.mulf %154, %342 : vector<1x1x256xf32>
    %344 = arith.addf %340, %343 : vector<1x1x256xf32>
    %c41 = arith.constant 41 : index
    %345 = memref.load %arg1[%c41] : memref<49xf32, #tpu.memory_space<smem>>
    %346 = vector.broadcast %345 : f32 to vector<1x1x256xf32>
    %347 = arith.mulf %168, %346 : vector<1x1x256xf32>
    %348 = arith.addf %344, %347 : vector<1x1x256xf32>
    %349 = vector.extract_strided_slice %348 {offsets = [0, 0, 32], sizes = [1, 1, 224], strides = [1, 1, 1]} : vector<1x1x256xf32> to vector<1x1x224xf32>
    %cst_67 = arith.constant 0.000000e+00 : f32
    %350 = vector.broadcast %cst_67 : f32 to vector<1x1x32xf32>
    %351 = tpu.concatenate %349, %350 in 2 : vector<1x1x224xf32>, vector<1x1x32xf32> -> vector<1x1x256xf32>
    %352 = arith.addf %321, %351 : vector<1x1x256xf32>
    %c42 = arith.constant 42 : index
    %353 = memref.load %arg1[%c42] : memref<49xf32, #tpu.memory_space<smem>>
    %354 = vector.broadcast %353 : f32 to vector<1x1x256xf32>
    %355 = arith.mulf %87, %354 : vector<1x1x256xf32>
    %c43 = arith.constant 43 : index
    %356 = memref.load %arg1[%c43] : memref<49xf32, #tpu.memory_space<smem>>
    %357 = vector.broadcast %356 : f32 to vector<1x1x256xf32>
    %358 = arith.mulf %101, %357 : vector<1x1x256xf32>
    %359 = arith.addf %355, %358 : vector<1x1x256xf32>
    %c44 = arith.constant 44 : index
    %360 = memref.load %arg1[%c44] : memref<49xf32, #tpu.memory_space<smem>>
    %361 = vector.broadcast %360 : f32 to vector<1x1x256xf32>
    %362 = arith.mulf %115, %361 : vector<1x1x256xf32>
    %363 = arith.addf %359, %362 : vector<1x1x256xf32>
    %c45 = arith.constant 45 : index
    %364 = memref.load %arg1[%c45] : memref<49xf32, #tpu.memory_space<smem>>
    %365 = vector.broadcast %364 : f32 to vector<1x1x256xf32>
    %366 = arith.mulf %126, %365 : vector<1x1x256xf32>
    %367 = arith.addf %363, %366 : vector<1x1x256xf32>
    %c46 = arith.constant 46 : index
    %368 = memref.load %arg1[%c46] : memref<49xf32, #tpu.memory_space<smem>>
    %369 = vector.broadcast %368 : f32 to vector<1x1x256xf32>
    %370 = arith.mulf %140, %369 : vector<1x1x256xf32>
    %371 = arith.addf %367, %370 : vector<1x1x256xf32>
    %c47 = arith.constant 47 : index
    %372 = memref.load %arg1[%c47] : memref<49xf32, #tpu.memory_space<smem>>
    %373 = vector.broadcast %372 : f32 to vector<1x1x256xf32>
    %374 = arith.mulf %154, %373 : vector<1x1x256xf32>
    %375 = arith.addf %371, %374 : vector<1x1x256xf32>
    %c48 = arith.constant 48 : index
    %376 = memref.load %arg1[%c48] : memref<49xf32, #tpu.memory_space<smem>>
    %377 = vector.broadcast %376 : f32 to vector<1x1x256xf32>
    %378 = arith.mulf %168, %377 : vector<1x1x256xf32>
    %379 = arith.addf %375, %378 : vector<1x1x256xf32>
    %380 = vector.extract_strided_slice %379 {offsets = [0, 0, 48], sizes = [1, 1, 208], strides = [1, 1, 1]} : vector<1x1x256xf32> to vector<1x1x208xf32>
    %cst_68 = arith.constant 0.000000e+00 : f32
    %381 = vector.broadcast %cst_68 : f32 to vector<1x1x48xf32>
    %382 = tpu.concatenate %380, %381 in 2 : vector<1x1x208xf32>, vector<1x1x48xf32> -> vector<1x1x256xf32>
    %383 = arith.addf %352, %382 : vector<1x1x256xf32>
    %384 = arith.negf %383 : vector<1x1x256xf32>
    %385 = math.exp %384 : vector<1x1x256xf32>
    %cst_69 = arith.constant 1.000000e+00 : f32
    %386 = vector.broadcast %cst_69 : f32 to vector<1x1x256xf32>
    %387 = arith.addf %386, %385 : vector<1x1x256xf32>
    %388 = arith.divf %386, %387 : vector<1x1x256xf32>
    %389 = vector.broadcast %388 : vector<1x1x256xf32> to vector<1x16x256xf32>
    %390 = arith.mulf %1, %389 : vector<1x16x256xf32>
    %c0_70 = arith.constant 0 : index
    %c0_71 = arith.constant 0 : index
    %c0_72 = arith.constant 0 : index
    %391 = vector.load %arg7[%c0_70, %c0_71, %c0_72] : memref<1x16x256xf32, #tpu.memory_space<vmem>>, vector<1x16x256xf32>
    tpu.vector_store %arg7[%c0_70, %c0_71, %c0_72], %390 {strides = array<i32>} : memref<1x16x256xf32, #tpu.memory_space<vmem>>, vector<1x16x256xf32>,
    return
  }
  func.func @transform_0(%arg0: i32, %arg1: memref<49xf32, #tpu.memory_space<smem>>) -> (i32, i32, i32) {
    %c0_i32 = arith.constant 0 : i32
    %c0_i32_0 = arith.constant 0 : i32
    %c0_i32_1 = arith.constant 0 : i32
    return %arg0, %c0_i32, %c0_i32_0 : i32, i32, i32
  }
  func.func @transform_1(%arg0: i32, %arg1: memref<49xf32, #tpu.memory_space<smem>>) -> (i32, i32, i32) {
    %c0_i32 = arith.constant 0 : i32
    %c0_i32_0 = arith.constant 0 : i32
    %c0_i32_1 = arith.constant 0 : i32
    return %arg0, %c0_i32, %c0_i32_0 : i32, i32, i32
  }
  func.func @transform_2(%arg0: i32, %arg1: memref<49xf32, #tpu.memory_space<smem>>) -> (i32, i32, i32) {
    %c0_i32 = arith.constant 0 : i32
    %c0_i32_0 = arith.constant 0 : i32
    %c0_i32_1 = arith.constant 0 : i32
    %c0_i32_2 = arith.constant 0 : i32
    return %c0_i32, %c0_i32_0, %c0_i32_1 : i32, i32, i32
  }
  func.func @transform_3(%arg0: i32, %arg1: memref<49xf32, #tpu.memory_space<smem>>) -> (i32, i32, i32) {
    %c0_i32 = arith.constant 0 : i32
    %c0_i32_0 = arith.constant 0 : i32
    %c0_i32_1 = arith.constant 0 : i32
    %c0_i32_2 = arith.constant 0 : i32
    return %c0_i32, %c0_i32_0, %c0_i32_1 : i32, i32, i32
  }
  func.func @transform_4(%arg0: i32, %arg1: memref<49xf32, #tpu.memory_space<smem>>) -> (i32, i32, i32) {
    %c0_i32 = arith.constant 0 : i32
    %c0_i32_0 = arith.constant 0 : i32
    %c0_i32_1 = arith.constant 0 : i32
    %c0_i32_2 = arith.constant 0 : i32
    return %c0_i32, %c0_i32_0, %c0_i32_1 : i32, i32, i32
  }
  func.func @transform_5(%arg0: i32, %arg1: memref<49xf32, #tpu.memory_space<smem>>) -> (i32, i32, i32) {
    %c0_i32 = arith.constant 0 : i32
    %c0_i32_0 = arith.constant 0 : i32
    %c0_i32_1 = arith.constant 0 : i32
    return %arg0, %c0_i32, %c0_i32_0 : i32, i32, i32
  }
}

</mosaic_0001>

<llo_original>
// kernel: tpu_custom_call.1
$region0: #{tpu_custom_call.1}
  #allocation0 [shape = 'u32[]', space=smem, size = 0x4, offset = 0x4, fixed_abs, tag = 'smem constant byte address 0x4 - core index']
  #allocation1 [shape = 'u32[144,128]{1,0:T(1,128)}', space=vmem, size = 0x12000, scoped, tag = 'internal scratch']
  #allocation2 [shape = 's32[1]{0}', space=sflag, size = 0x4, scoped, tag = 'scoped memory for tpu_custom_call.1']
  #allocation3 [shape = 'u8[512]{0}', space=smem, size = 0x200, scoped, tag = 'prefetched SMEM operand 0']
  %s0 = inlined_call_operand.vmem [shape: f32[49], index: 0, kind: input, shape index: {}]
  %s1 = inlined_call_operand.vmem [shape: f32[2,16,256], index: 1, kind: input, shape index: {}]
  %s2 = inlined_call_operand.hbm [shape: f32[2,16,256], index: 2, kind: input, shape index: {}]
  %s3 = inlined_call_operand.vmem [shape: f32[2,16,1], index: 3, kind: input, shape index: {}]
  %s4 = inlined_call_operand.vmem [shape: f32[2,16,1], index: 4, kind: input, shape index: {}]
  %s5 = inlined_call_operand.vmem [shape: f32[2,16,1], index: 5, kind: input, shape index: {}]
  %s6 = inlined_call_operand.hbm [shape: f32[2,16,256], index: 6, kind: output, shape index: {}]
  %s7 = sld [smem:[#allocation0]]
  $region57: #{tpu_custom_call.1} parent=0
    _
  %s9 = ssub.s32 1, %s7
  %s10 = scalar_select 0, %s9, %s7
  %s11 = sshll.u32 %s0, 4
  %s12 = int_to_ptr.vmem [resolvable:$true] %s11
  %14 = dma.vmem_to_smem %s12, 16, [#allocation3], [#allocation2]
  %15 = dma.done [#allocation2], 16
  %16 = sfence
  $region1: #{tpu_custom_call.1} parent=0
    #allocation4 [shape = 'u8[32768]{0}', space=vmem, size = 0x8000, scoped, tag = 'input window, operand 2']
    #allocation5 [shape = 's32[2]{0}', space=sflag, size = 0x8, scoped, tag = 'scoped memory for tpu_custom_call.1']
    #allocation6 [shape = 's32[2]{0}', space=sflag, size = 0x8, scoped, tag = 'scoped memory for tpu_custom_call.1']
    #allocation7 [shape = 'u8[32768]{0}', space=vmem, size = 0x8000, scoped, tag = 'output window, operand 0']
    %17 = vsyncpa [#allocation5], 0
    %s18 = scalar_lea.sflag [#allocation5], 1
    %19 = vsyncpa %s18, 0
    %20 = vsyncpa [#allocation6], 0
    %s21 = scalar_lea.sflag [#allocation6], 1
    %22 = vsyncpa %s21, 0
    loop: start=0, step=1, limit=4
    $region2: #{tpu_custom_call.1} parent=1 // loop_pre_header
      _
    $region3: #{tpu_custom_call.1} parent=1 // loop_header
      %s24 = sphi 0, %s28
      %p25 = scmp.ge.s32.totalorder %s24, 4
      %s34 = sphi 0, %s36
      %s37 = sphi 0, %s34
      %s38 = sphi 0, %s37
      %s54 = sphi 0, %s38
      %s60 = sphi 0, %s62
      %s63 = sphi 0, %s60
      %s64 = sphi 0, %s63
      %s80 = sphi 0, %s64
      %s84 = sphi 0, %s84
      %s86 = sphi 0, %s84
      %s87 = sphi 0, %s86
      %s101 = sphi 0, %s87
      %s105 = sphi 0, %s105
      %s107 = sphi 0, %s105
      %s108 = sphi 0, %s107
      %s122 = sphi 0, %s108
      %s126 = sphi 0, %s126
      %s128 = sphi 0, %s126
      %s129 = sphi 0, %s128
      %s143 = sphi 0, %s129
      %s149 = sphi 0, %s151
      %s152 = sphi 0, %s149
      %s153 = sphi 0, %s152
      %s169 = sphi 0, %s153
    $region4: #{tpu_custom_call.1} parent=1 // loop_header_branch
      %27 = sbr.rel (%p25) target = $region8
    $region5: #{tpu_custom_call.1} parent=1 // loop_body
      %s29 = ssub.s32 %s24, 1
      %s30 = ssub.s32 %s24, 2
      %s31 = sadd.s32 %s24, 1
      %s32 = ssub.s32 %s24, %s31
      %p33 = scmp.eq.s32.totalorder %s32, 0
      %s35 = sadd.s32 %s34, 1
      %s36 = scalar_select %p33, %s34, %s35
      %p39 = pneg %p33
      %p40 = scmp.eq.s32.totalorder %s24, 1
      %p41 = por %p39, %p40
      %p42 = scmp.ne.s32.totalorder %s34, %s37
      %p43 = scmp.eq.s32.totalorder %s24, 0
      %p44 = por %p42, %p43
      %p45 = scmp.ne.s32.totalorder %s34, %s37
      %p46 = scmp.eq.s32.totalorder %s29, 1
      %p47 = por %p45, %p46
      %p48 = scmp.ne.s32.totalorder %s37, %s38
      %p49 = scmp.eq.s32.totalorder %s29, 0
      %p50 = por %p48, %p49
      %p51 = scmp.ne.s32.totalorder %s37, %s38
      %p52 = scmp.eq.s32.totalorder %s30, 1
      %p53 = por %p51, %p52
      %p55 = scmp.ne.s32.totalorder %s38, %s54
      %p56 = scmp.eq.s32.totalorder %s30, 0
      %p57 = por %p55, %p56
      %s58 = ssub.s32 %s24, %s31
      %p59 = scmp.eq.s32.totalorder %s58, 0
      %s61 = sadd.s32 %s60, 1
      %s62 = scalar_select %p59, %s60, %s61
      %p65 = pneg %p59
      %p66 = scmp.eq.s32.totalorder %s24, 1
      %p67 = por %p65, %p66
      %p68 = scmp.ne.s32.totalorder %s60, %s63
      %p69 = scmp.eq.s32.totalorder %s24, 0
      %p70 = por %p68, %p69
      %p71 = scmp.ne.s32.totalorder %s60, %s63
      %p72 = scmp.eq.s32.totalorder %s29, 1
      %p73 = por %p71, %p72
      %p74 = scmp.ne.s32.totalorder %s63, %s64
      %p75 = scmp.eq.s32.totalorder %s29, 0
      %p76 = por %p74, %p75
      %p77 = scmp.ne.s32.totalorder %s63, %s64
      %p78 = scmp.eq.s32.totalorder %s30, 1
      %p79 = por %p77, %p78
      %p81 = scmp.ne.s32.totalorder %s64, %s80
      %p82 = scmp.eq.s32.totalorder %s30, 0
      %p83 = por %p81, %p82
      %s85 = sadd.s32 %s84, 1
      %p88 = scmp.eq.s32.totalorder %s24, 1
      %p89 = scmp.ne.s32.totalorder %s84, %s86
      %p90 = scmp.eq.s32.totalorder %s24, 0
      %p91 = por %p89, %p90
      %p92 = scmp.ne.s32.totalorder %s84, %s86
      %p93 = scmp.eq.s32.totalorder %s29, 1
      %p94 = por %p92, %p93
      %p95 = scmp.ne.s32.totalorder %s86, %s87
      %p96 = scmp.eq.s32.totalorder %s29, 0
      %p97 = por %p95, %p96
      %p98 = scmp.ne.s32.totalorder %s86, %s87
      %p99 = scmp.eq.s32.totalorder %s30, 1
      %p100 = por %p98, %p99
      %p102 = scmp.ne.s32.totalorder %s87, %s101
      %p103 = scmp.eq.s32.totalorder %s30, 0
      %p104 = por %p102, %p103
      %s106 = sadd.s32 %s105, 1
      %p109 = scmp.eq.s32.totalorder %s24, 1
      %p110 = scmp.ne.s32.totalorder %s105, %s107
      %p111 = scmp.eq.s32.totalorder %s24, 0
      %p112 = por %p110, %p111
      %p113 = scmp.ne.s32.totalorder %s105, %s107
      %p114 = scmp.eq.s32.totalorder %s29, 1
      %p115 = por %p113, %p114
      %p116 = scmp.ne.s32.totalorder %s107, %s108
      %p117 = scmp.eq.s32.totalorder %s29, 0
      %p118 = por %p116, %p117
      %p119 = scmp.ne.s32.totalorder %s107, %s108
      %p120 = scmp.eq.s32.totalorder %s30, 1
      %p121 = por %p119, %p120
      %p123 = scmp.ne.s32.totalorder %s108, %s122
      %p124 = scmp.eq.s32.totalorder %s30, 0
      %p125 = por %p123, %p124
      %s127 = sadd.s32 %s126, 1
      %p130 = scmp.eq.s32.totalorder %s24, 1
      %p131 = scmp.ne.s32.totalorder %s126, %s128
      %p132 = scmp.eq.s32.totalorder %s24, 0
      %p133 = por %p131, %p132
      %p134 = scmp.ne.s32.totalorder %s126, %s128
      %p135 = scmp.eq.s32.totalorder %s29, 1
      %p136 = por %p134, %p135
      %p137 = scmp.ne.s32.totalorder %s128, %s129
      %p138 = scmp.eq.s32.totalorder %s29, 0
      %p139 = por %p137, %p138
      %p140 = scmp.ne.s32.totalorder %s128, %s129
      %p141 = scmp.eq.s32.totalorder %s30, 1
      %p142 = por %p140, %p141
      %p144 = scmp.ne.s32.totalorder %s129, %s143
      %p145 = scmp.eq.s32.totalorder %s30, 0
      %p146 = por %p144, %p145
      %s147 = ssub.s32 %s24, %s31
      %p148 = scmp.eq.s32.totalorder %s147, 0
      %s150 = sadd.s32 %s149, 1
      %s151 = scalar_select %p148, %s149, %s150
      %p154 = pneg %p148
      %p155 = scmp.eq.s32.totalorder %s24, 1
      %p156 = por %p154, %p155
      %p157 = scmp.ne.s32.totalorder %s149, %s152
      %p158 = scmp.eq.s32.totalorder %s24, 0
      %p159 = por %p157, %p158
      %p160 = scmp.ne.s32.totalorder %s149, %s152
      %p161 = scmp.eq.s32.totalorder %s29, 1
      %p162 = por %p160, %p161
      %p163 = scmp.ne.s32.totalorder %s152, %s153
      %p164 = scmp.eq.s32.totalorder %s29, 0
      %p165 = por %p163, %p164
      %p166 = scmp.ne.s32.totalorder %s152, %s153
      %p167 = scmp.eq.s32.totalorder %s30, 1
      %p168 = por %p166, %p167
      %p170 = scmp.ne.s32.totalorder %s153, %s169
      %p171 = scmp.eq.s32.totalorder %s30, 0
      %p172 = por %p170, %p171
      %p173 = scmp.le.s32.totalorder 1, %s24
      %p174 = scmp.lt.s32.totalorder %s24, 3
      %p175 = pnand %p173, %p174
      %p176 = pneg %p175
      // Predicated region
      $region9: #{tpu_custom_call.1} parent=5 // pred_check
        _
      $region10: #{tpu_custom_call.1} parent=5 // pred_check_branch
        %178 = sbr.rel (%p175) target = $region12
      $region11: #{tpu_custom_call.1} parent=5 // pred_region
        %s179 = ssub.s32 %s24, 1
        // Predicated region
        $region13: #{tpu_custom_call.1} parent=11 // pred_check
          %p180 = pneg %p97
        $region14: #{tpu_custom_call.1} parent=11 // pred_check_branch
          %182 = sbr.rel (%p180) target = $region16
        $region15: #{tpu_custom_call.1} parent=11 // pred_region
          _
        $region16: #{tpu_custom_call.1} parent=11 // pred_fallthru
          _
        // Predicated region
        $region17: #{tpu_custom_call.1} parent=11 // pred_check
          %p183 = pneg %p118
        $region18: #{tpu_custom_call.1} parent=11 // pred_check_branch
          %185 = sbr.rel (%p183) target = $region20
        $region19: #{tpu_custom_call.1} parent=11 // pred_region
          _
        $region20: #{tpu_custom_call.1} parent=11 // pred_fallthru
          _
        // Predicated region
        $region21: #{tpu_custom_call.1} parent=11 // pred_check
          %p186 = pneg %p139
        $region22: #{tpu_custom_call.1} parent=11 // pred_check_branch
          %188 = sbr.rel (%p186) target = $region24
        $region23: #{tpu_custom_call.1} parent=11 // pred_region
          _
        $region24: #{tpu_custom_call.1} parent=11 // pred_fallthru
          _
      $region12: #{tpu_custom_call.1} parent=5 // pred_fallthru
        _
      %p189 = scmp.lt.s32.totalorder %s24, 2
      // Predicated region
      $region25: #{tpu_custom_call.1} parent=5 // pred_check
        %p190 = pneg %p189
      $region26: #{tpu_custom_call.1} parent=5 // pred_check_branch
        %192 = sbr.rel (%p190) target = $region28
      $region27: #{tpu_custom_call.1} parent=5 // pred_region
        // Predicated region
        $region29: #{tpu_custom_call.1} parent=27 // pred_check
          %p193 = pneg %p44
        $region30: #{tpu_custom_call.1} parent=27 // pred_check_branch
          %195 = sbr.rel (%p193) target = $region32
        $region31: #{tpu_custom_call.1} parent=27 // pred_region
          %p196 = scmp.lt.s32.totalorder %s24, 1
          %s197 = scalar_select %p196, %s24, 1
          %s198 = smul.addr %s197, 4
          %s199 = smul.addr %s198, 8
          %s200 = scalar_lea.vmem %s1, %s199
        $region32: #{tpu_custom_call.1} parent=27 // pred_fallthru
          _
        // Predicated region
        $region33: #{tpu_custom_call.1} parent=27 // pred_check
          %p201 = pneg %p70
        $region34: #{tpu_custom_call.1} parent=27 // pred_check_branch
          %203 = sbr.rel (%p201) target = $region36
        $region35: #{tpu_custom_call.1} parent=27 // pred_region
          %s204 = sand.u32 %s60, 1
          %s205 = scalar_lea.sflag [#allocation5], %s204
          %s206 = sand.u32 %s60, 1
          %s207 = smul.addr %s206, 32
          %s208 = scalar_lea.vmem [#allocation4], %s207
          %s210 = ssub.s32 512, 512
          %211 = vsyncadd %s205, %s210
          %s212 = smul.addr %s24, 4
          %s213 = smul.addr %s212, 128
          %s214 = scalar_lea.hbm %s2, %s213
          %s215 = sshll.u32 %s208, 4
          %s216 = int_to_ptr.vmem [resolvable:$true] %s215
          %221 = dma.hbm_to_vmem [thread:$0]  %s214, 512, %s216, %s205, 256, 256, 16
        $region36: #{tpu_custom_call.1} parent=27 // pred_fallthru
          _
      $region28: #{tpu_custom_call.1} parent=5 // pred_fallthru
        _
      %p222 = scmp.le.s32.totalorder 1, %s24
      %p223 = scmp.lt.s32.totalorder %s24, 3
      %p224 = pnand %p222, %p223
      %p225 = pneg %p224
      // Predicated region
      $region37: #{tpu_custom_call.1} parent=5 // pred_check
        _
      $region38: #{tpu_custom_call.1} parent=5 // pred_check_branch
        %227 = sbr.rel (%p224) target = $region40
      $region39: #{tpu_custom_call.1} parent=5 // pred_region
        %s228 = ssub.s32 %s24, 1
        %s229 = sand.u32 %s63, 1
        %s230 = scalar_lea.sflag [#allocation5], %s229
        %s231 = sand.u32 %s63, 1
        %s232 = smul.addr %s231, 32
        %s233 = scalar_lea.vmem [#allocation4], %s232
        // Predicated region
        $region41: #{tpu_custom_call.1} parent=39 // pred_check
          %p234 = pneg %p76
        $region42: #{tpu_custom_call.1} parent=39 // pred_check_branch
          %236 = sbr.rel (%p234) target = $region44
        $region43: #{tpu_custom_call.1} parent=39 // pred_region
          %237 = dma.done %s230, 512
        $region44: #{tpu_custom_call.1} parent=39 // pred_fallthru
          _
        %p238 = scmp.lt.s32.totalorder %s29, 1
        %s239 = scalar_select %p238, %s29, 1
        %s240 = smul.addr %s239, 4
        %s241 = smul.addr %s240, 8
        %s242 = scalar_lea.vmem %s1, %s241
        %p243 = pneg %p50
        %p244 = pneg %p47
        %s245 = sand.u32 %s63, 1
        %s246 = scalar_lea.sflag [#allocation5], %s245
        %s247 = sand.u32 %s63, 1
        %s248 = smul.addr %s247, 32
        %s249 = scalar_lea.vmem [#allocation4], %s248
        %p250 = pneg %p76
        %p251 = pneg %p73
        %p252 = pneg %p97
        %p253 = pneg %p94
        %p254 = pneg %p118
        %p255 = pneg %p115
        %p256 = pneg %p139
        %p257 = pneg %p136
        %p258 = pneg %p165
        %p259 = pneg %p162
        %s260 = sand.u32 %s152, 1
        %s261 = scalar_lea.sflag [#allocation6], %s260
        %s262 = sand.u32 %s152, 1
        %s263 = smul.addr %s262, 32
        %s264 = scalar_lea.vmem [#allocation7], %s263
        %p265 = scmp.lt.s32.totalorder %s29, 1
        %s266 = scalar_select %p265, %s29, 1
        %s267 = smul.addr %s266, 4
        %s268 = smul.addr %s267, 8
        %s269 = scalar_lea.vmem %s1, %s268
        %v270 = vld [vmem:[%s269] sm:$0xff]
        %v271 = vld [vmem:[%s269 + $0x8] sm:$0xff]
        %v272 = vld [vmem:[%s269 + $0x10] sm:$0xff]
        %v273 = vld [vmem:[%s269 + $0x18] sm:$0xff]
        %v274 = vld [vmem:[%s233] sm:$0xff]
        %v275 = vld [vmem:[%s233 + $0x8] sm:$0xff]
        %v276 = vld [vmem:[%s233 + $0x10] sm:$0xff]
        %v277 = vld [vmem:[%s233 + $0x18] sm:$0xff]
        %v278 = vmax.f32 %v270, %v271
        %279 = vmax.xlane.f32.xlu0 %v278
        %v280 = vpop.xlane.xlu0 %279
        %v281 = vmax.f32 %v272, %v273
        %282 = vmax.xlane.f32.xlu0 %v281
        %v283 = vpop.xlane.xlu0 %282
        %v284 = vmax.f32 %v274, %v275
        %285 = vmax.xlane.f32.xlu0 %v284
        %v286 = vpop.xlane.xlu0 %285
        %v287 = vmax.f32 %v276, %v277
        %288 = vmax.xlane.f32.xlu0 %v287
        %v289 = vpop.xlane.xlu0 %288
        %v290 = vld [vmem:[%s3] sm:$0xff]
        %v291 = vld [vmem:[%s3 + $0x8] sm:$0xff]
        %v292 = vld [vmem:[%s3 + $0x10] sm:$0xff]
        %v293 = vld [vmem:[%s3 + $0x18] sm:$0xff]
        %v294 = vld [vmem:[%s4] sm:$0xff]
        %v295 = vld [vmem:[%s4 + $0x8] sm:$0xff]
        %v296 = vld [vmem:[%s4 + $0x10] sm:$0xff]
        %v297 = vld [vmem:[%s4 + $0x18] sm:$0xff]
        %v298 = vld [vmem:[%s5] sm:$0xff]
        %v299 = vld [vmem:[%s5 + $0x8] sm:$0xff]
        %v300 = vld [vmem:[%s5 + $0x10] sm:$0xff]
        %v301 = vld [vmem:[%s5 + $0x18] sm:$0xff]
        %v302 = vmul.f32 %v280, %v290
        %v303 = vmul.f32 %v283, %v291
        %v304 = vmul.f32 %v286, %v294
        %v305 = vmul.f32 %v289, %v295
        %v306 = vadd.f32 %v302, %v304
        %v307 = vadd.f32 %v303, %v305
        %vm308 = vcmask 7168
        %v309 = vsel %vm308, %v306, 0.0
        %v310 = vsel %vm308, %v307, 0.0
        %v311 = vadd.f32 %v309, %v310
        %v312 = vrot.slane %v311, 4
        %v313 = vadd.f32 %v311, %v312
        %v314 = vrot.slane %v313, 2
        %v315 = vadd.f32 %v313, %v314
        %v316 = vrot.slane %v315, 1
        %v317 = vadd.f32 %v315, %v316
        %v318 = vmax.f32 %v317, 0.0
        %v319 = vmul.f32 %v318, %v298
        %v320 = vmul.f32 %v318, %v299
        %v321 = vadd.f32 %v319, 0.0
        %v322 = vadd.f32 %v320, 0.0
        %v323 = vmul.f32 %v280, %v292
        %v324 = vmul.f32 %v283, %v293
        %v325 = vmul.f32 %v286, %v296
        %v326 = vmul.f32 %v289, %v297
        %v327 = vadd.f32 %v323, %v325
        %v328 = vadd.f32 %v324, %v326
        %v329 = vsel %vm308, %v327, 0.0
        %v330 = vsel %vm308, %v328, 0.0
        %v331 = vadd.f32 %v329, %v330
        %v332 = vrot.slane %v331, 4
        %v333 = vadd.f32 %v331, %v332
        %v334 = vrot.slane %v333, 2
        %v335 = vadd.f32 %v333, %v334
        %v336 = vrot.slane %v335, 1
        %v337 = vadd.f32 %v335, %v336
        %v338 = vmax.f32 %v337, 0.0
        %v339 = vmul.f32 %v338, %v300
        %v340 = vmul.f32 %v338, %v301
        %v341 = vadd.f32 %v321, %v339
        %v342 = vadd.f32 %v322, %v340
        %v343 = vxor.u32 %v341, 2147483648
        %v344 = vxor.u32 %v342, 2147483648
        %v345 = vmul.f32 %v343, 1.442695
        %v346 = vpow.pop %v345
        %v347 = vmul.f32 %v344, 1.442695
        %v348 = vpow.pop %v347
        %v349 = vadd.f32 %v346, 1.0
        %v350 = vadd.f32 %v348, 1.0
        %v351 = vrcp.pop %v349
        %v352 = vmul.f32 1.0, %v351
        %v353 = vrcp.pop %v350
        %v354 = vmul.f32 1.0, %v353
        %356 = vset.pattern.permute.xlu0 0
        %357 = vperm.xlu0 %356, %v352
        %v358 = vpop.permute.xlu0 %357
        %361 = vset.pattern.permute.xlu0 0
        %362 = vperm.xlu0 %361, %v354
        %v363 = vpop.permute.xlu0 %362
        %v365 = vmul.f32 %v274, %v358
        %v366 = vmul.f32 %v275, %v358
        %v367 = vmul.f32 %v276, %v363
        %v368 = vmul.f32 %v277, %v363
        %v369 = vmax.f32 %v365, %v367
        %v370 = vrot.slane %v369, 4
        %v371 = vmax.f32 %v369, %v370
        %v372 = vrot.slane %v371, 2
        %v373 = vmax.f32 %v371, %v372
        %v374 = vrot.slane %v373, 1
        %v375 = vmax.f32 %v373, %v374
        %v376 = vmax.f32 %v366, %v368
        %v377 = vrot.slane %v376, 4
        %v378 = vmax.f32 %v376, %v377
        %v379 = vrot.slane %v378, 2
        %v380 = vmax.f32 %v378, %v379
        %v381 = vrot.slane %v380, 1
        %v382 = vmax.f32 %v380, %v381
        %v383 = vlaneseq
        %v384 = vand.u32 %v383, 127
        %v385 = vadd.s32 %v384, 128
        %vm386 = vcmp.lt.s32.totalorder %v384, 0
        %v387 = vsub.s32 0, %v384
        %v388 = vsel %vm386, %v387, %v384
        %v389 = vshrl.u32 %v388, 4
        %v390 = vand.u32 %v388, 15
        %v391 = vsub.s32 0, %v390
        %v392 = vsel %vm386, %v391, %v390
        %vm393 = vcmp.lt.s32.totalorder %v385, 0
        %v394 = vsub.s32 0, %v385
        %v395 = vsel %vm393, %v394, %v385
        %v396 = vshrl.u32 %v395, 4
        %v397 = vand.u32 %v395, 15
        %v398 = vsub.s32 0, %v397
        %v399 = vsel %vm393, %v398, %v397
        %vm400 = vcmp.ne.s32.totalorder %v392, 0
        %vm401 = vcmp.ne.s32.totalorder %v399, 0
        %vm402 = vcmp.lt.s32.totalorder %v392, 0
        %vm403 = vcmp.lt.s32.totalorder %v399, 0
        %vm404 = vmand %vm402, %vm400
        %vm405 = vmand %vm403, %vm401
        %v406 = vadd.s32 %v392, 16
        %v407 = vadd.s32 %v399, 16
        %v408 = vsel %vm404, %v406, %v392
        %v409 = vsel %vm405, %v407, %v399
        %v410 = vadd.s32 %v408, 4294967293
        %v411 = vadd.s32 %v409, 4294967293
        %vm412 = vcmp.ge.s32.totalorder %v410, 0
        %vm413 = vcmp.ge.s32.totalorder %v411, 0
        %vm414 = vcmp.lt.s32.totalorder %v410, 16
        %vm415 = vcmp.lt.s32.totalorder %v411, 16
        %vm416 = vmand %vm412, %vm414
        %vm417 = vmand %vm413, %vm415
        %420 = vrot.lane.b32.xlu0 %v375, 3
        %v421 = vpop.permute.xlu0 %420
        %422 = vrot.lane.b32.xlu0 %v382, 3
        %v423 = vpop.permute.xlu0 %422
        %vm424 = vcmask 23552
        %v425 = vsel %vm424, %v421, %v423
        %v428 = vsel %vm424, 0.0, %v421
        %v429 = vsel %vm416, %v428, 0.0
        %v430 = vsel %vm417, %v425, 0.0
        %v431 = vadd.s32 %v408, 4294967294
        %v432 = vadd.s32 %v409, 4294967294
        %vm433 = vcmp.ge.s32.totalorder %v431, 0
        %vm434 = vcmp.ge.s32.totalorder %v432, 0
        %vm435 = vcmp.lt.s32.totalorder %v431, 16
        %vm436 = vcmp.lt.s32.totalorder %v432, 16
        %vm437 = vmand %vm433, %vm435
        %vm438 = vmand %vm434, %vm436
        %439 = vrot.lane.b32.xlu0 %v375, 2
        %v440 = vpop.permute.xlu0 %439
        %441 = vrot.lane.b32.xlu0 %v382, 2
        %v442 = vpop.permute.xlu0 %441
        %vm443 = vcmask 15360
        %v444 = vsel %vm443, %v440, %v442
        %v447 = vsel %vm443, 0.0, %v440
        %v448 = vsel %vm437, %v447, 0.0
        %v449 = vsel %vm438, %v444, 0.0
        %v450 = vadd.s32 %v408, 4294967295
        %v451 = vadd.s32 %v409, 4294967295
        %vm452 = vcmp.ge.s32.totalorder %v450, 0
        %vm453 = vcmp.ge.s32.totalorder %v451, 0
        %vm454 = vcmp.lt.s32.totalorder %v450, 16
        %vm455 = vcmp.lt.s32.totalorder %v451, 16
        %vm456 = vmand %vm452, %vm454
        %vm457 = vmand %vm453, %vm455
        %458 = vrot.lane.b32.xlu0 %v375, 1
        %v459 = vpop.permute.xlu0 %458
        %460 = vrot.lane.b32.xlu0 %v382, 1
        %v461 = vpop.permute.xlu0 %460
        %v462 = vsel %vm308, %v459, %v461
        %v465 = vsel %vm308, 0.0, %v459
        %v466 = vsel %vm456, %v465, 0.0
        %v467 = vsel %vm457, %v462, 0.0
        %vm468 = vcmp.ge.s32.totalorder %v408, 0
        %vm469 = vcmp.ge.s32.totalorder %v409, 0
        %vm470 = vcmp.lt.s32.totalorder %v408, 16
        %vm471 = vcmp.lt.s32.totalorder %v409, 16
        %vm472 = vmand %vm468, %vm470
        %vm473 = vmand %vm469, %vm471
        %v474 = vsel %vm472, %v375, 0.0
        %v475 = vsel %vm473, %v382, 0.0
        %v476 = vadd.s32 %v408, 1
        %v477 = vadd.s32 %v409, 1
        %vm478 = vcmp.ge.s32.totalorder %v476, 0
        %vm479 = vcmp.ge.s32.totalorder %v477, 0
        %vm480 = vcmp.lt.s32.totalorder %v476, 16
        %vm481 = vcmp.lt.s32.totalorder %v477, 16
        %vm482 = vmand %vm478, %vm480
        %vm483 = vmand %vm479, %vm481
        %484 = vrot.lane.b32.xlu0 %v375, 127
        %v485 = vpop.permute.xlu0 %484
        %486 = vrot.lane.b32.xlu0 %v382, 127
        %v487 = vpop.permute.xlu0 %486
        %vm488 = vcmask 1039360
        %v489 = vsel %vm488, %v485, %v487
        %v492 = vsel %vm488, %v487, 0.0
        %v493 = vsel %vm482, %v489, 0.0
        %v494 = vsel %vm483, %v492, 0.0
        %v495 = vadd.s32 %v408, 2
        %v496 = vadd.s32 %v409, 2
        %vm497 = vcmp.ge.s32.totalorder %v495, 0
        %vm498 = vcmp.ge.s32.totalorder %v496, 0
        %vm499 = vcmp.lt.s32.totalorder %v495, 16
        %vm500 = vcmp.lt.s32.totalorder %v496, 16
        %vm501 = vmand %vm497, %vm499
        %vm502 = vmand %vm498, %vm500
        %503 = vrot.lane.b32.xlu0 %v375, 126
        %v504 = vpop.permute.xlu0 %503
        %505 = vrot.lane.b32.xlu0 %v382, 126
        %v506 = vpop.permute.xlu0 %505
        %vm507 = vcmask 1031168
        %v508 = vsel %vm507, %v504, %v506
        %v511 = vsel %vm507, %v506, 0.0
        %v512 = vsel %vm501, %v508, 0.0
        %v513 = vsel %vm502, %v511, 0.0
        %v514 = vadd.s32 %v408, 3
        %v515 = vadd.s32 %v409, 3
        %vm516 = vcmp.ge.s32.totalorder %v514, 0
        %vm517 = vcmp.ge.s32.totalorder %v515, 0
        %vm518 = vcmp.lt.s32.totalorder %v514, 16
        %vm519 = vcmp.lt.s32.totalorder %v515, 16
        %vm520 = vmand %vm516, %vm518
        %vm521 = vmand %vm517, %vm519
        %522 = vrot.lane.b32.xlu0 %v375, 125
        %v523 = vpop.permute.xlu0 %522
        %524 = vrot.lane.b32.xlu0 %v382, 125
        %v525 = vpop.permute.xlu0 %524
        %vm526 = vcmask 1022976
        %v527 = vsel %vm526, %v523, %v525
        %v530 = vsel %vm526, %v525, 0.0
        %v531 = vsel %vm520, %v527, 0.0
        %v532 = vsel %vm521, %v530, 0.0
        %s533 = sld [smem:[#allocation3]]
        %v534 = vstv %s533
        %v535 = vmul.f32 %v429, %v534
        %v536 = vmul.f32 %v430, %v534
        %s537 = sld [smem:[#allocation3 + $0x1]]
        %v538 = vstv %s537
        %v539 = vmul.f32 %v448, %v538
        %v540 = vmul.f32 %v449, %v538
        %v541 = vadd.f32 %v535, %v539
        %v542 = vadd.f32 %v536, %v540
        %s543 = sld [smem:[#allocation3 + $0x2]]
        %v544 = vstv %s543
        %v545 = vmul.f32 %v466, %v544
        %v546 = vmul.f32 %v467, %v544
        %v547 = vadd.f32 %v541, %v545
        %v548 = vadd.f32 %v542, %v546
        %s549 = sld [smem:[#allocation3 + $0x3]]
        %v550 = vstv %s549
        %v551 = vmul.f32 %v474, %v550
        %v552 = vmul.f32 %v475, %v550
        %v553 = vadd.f32 %v547, %v551
        %v554 = vadd.f32 %v548, %v552
        %s555 = sld [smem:[#allocation3 + $0x4]]
        %v556 = vstv %s555
        %v557 = vmul.f32 %v493, %v556
        %v558 = vmul.f32 %v494, %v556
        %v559 = vadd.f32 %v553, %v557
        %v560 = vadd.f32 %v554, %v558
        %s561 = sld [smem:[#allocation3 + $0x5]]
        %v562 = vstv %s561
        %v563 = vmul.f32 %v512, %v562
        %v564 = vmul.f32 %v513, %v562
        %v565 = vadd.f32 %v559, %v563
        %v566 = vadd.f32 %v560, %v564
        %s567 = sld [smem:[#allocation3 + $0x6]]
        %v568 = vstv %s567
        %v569 = vmul.f32 %v531, %v568
        %v570 = vmul.f32 %v532, %v568
        %v571 = vadd.f32 %v565, %v569
        %v572 = vadd.f32 %v566, %v570
        %575 = vrot.lane.b32.xlu0 %v571, 48
        %v576 = vpop.permute.xlu0 %575
        %577 = vrot.lane.b32.xlu0 %v572, 48
        %v578 = vpop.permute.xlu0 %577
        %vm579 = vcmask 392192
        %v580 = vsel %vm579, %v576, %v578
        %v583 = vsel %vm579, 0.0, %v576
        %v584 = vadd.f32 %v583, 0.0
        %v585 = vadd.f32 %v580, 0.0
        %s586 = sld [smem:[#allocation3 + $0x7]]
        %v587 = vstv %s586
        %v588 = vmul.f32 %v429, %v587
        %v589 = vmul.f32 %v430, %v587
        %s590 = sld [smem:[#allocation3 + $0x8]]
        %v591 = vstv %s590
        %v592 = vmul.f32 %v448, %v591
        %v593 = vmul.f32 %v449, %v591
        %v594 = vadd.f32 %v588, %v592
        %v595 = vadd.f32 %v589, %v593
        %s596 = sld [smem:[#allocation3 + $0x9]]
        %v597 = vstv %s596
        %v598 = vmul.f32 %v466, %v597
        %v599 = vmul.f32 %v467, %v597
        %v600 = vadd.f32 %v594, %v598
        %v601 = vadd.f32 %v595, %v599
        %s602 = sld [smem:[#allocation3 + $0xa]]
        %v603 = vstv %s602
        %v604 = vmul.f32 %v474, %v603
        %v605 = vmul.f32 %v475, %v603
        %v606 = vadd.f32 %v600, %v604
        %v607 = vadd.f32 %v601, %v605
        %s608 = sld [smem:[#allocation3 + $0xb]]
        %v609 = vstv %s608
        %v610 = vmul.f32 %v493, %v609
        %v611 = vmul.f32 %v494, %v609
        %v612 = vadd.f32 %v606, %v610
        %v613 = vadd.f32 %v607, %v611
        %s614 = sld [smem:[#allocation3 + $0xc]]
        %v615 = vstv %s614
        %v616 = vmul.f32 %v512, %v615
        %v617 = vmul.f32 %v513, %v615
        %v618 = vadd.f32 %v612, %v616
        %v619 = vadd.f32 %v613, %v617
        %s620 = sld [smem:[#allocation3 + $0xd]]
        %v621 = vstv %s620
        %v622 = vmul.f32 %v531, %v621
        %v623 = vmul.f32 %v532, %v621
        %v624 = vadd.f32 %v618, %v622
        %v625 = vadd.f32 %v619, %v623
        %628 = vrot.lane.b32.xlu0 %v624, 32
        %v629 = vpop.permute.xlu0 %628
        %630 = vrot.lane.b32.xlu0 %v625, 32
        %v631 = vpop.permute.xlu0 %630
        %vm632 = vcmask 261120
        %v633 = vsel %vm632, %v629, %v631
        %v636 = vsel %vm632, 0.0, %v629
        %v637 = vadd.f32 %v584, %v636
        %v638 = vadd.f32 %v585, %v633
        %s639 = sld [smem:[#allocation3 + $0xe]]
        %v640 = vstv %s639
        %v641 = vmul.f32 %v429, %v640
        %v642 = vmul.f32 %v430, %v640
        %s643 = sld [smem:[#allocation3 + $0xf]]
        %v644 = vstv %s643
        %v645 = vmul.f32 %v448, %v644
        %v646 = vmul.f32 %v449, %v644
        %v647 = vadd.f32 %v641, %v645
        %v648 = vadd.f32 %v642, %v646
        %s649 = sld [smem:[#allocation3 + $0x10]]
        %v650 = vstv %s649
        %v651 = vmul.f32 %v466, %v650
        %v652 = vmul.f32 %v467, %v650
        %v653 = vadd.f32 %v647, %v651
        %v654 = vadd.f32 %v648, %v652
        %s655 = sld [smem:[#allocation3 + $0x11]]
        %v656 = vstv %s655
        %v657 = vmul.f32 %v474, %v656
        %v658 = vmul.f32 %v475, %v656
        %v659 = vadd.f32 %v653, %v657
        %v660 = vadd.f32 %v654, %v658
        %s661 = sld [smem:[#allocation3 + $0x12]]
        %v662 = vstv %s661
        %v663 = vmul.f32 %v493, %v662
        %v664 = vmul.f32 %v494, %v662
        %v665 = vadd.f32 %v659, %v663
        %v666 = vadd.f32 %v660, %v664
        %s667 = sld [smem:[#allocation3 + $0x13]]
        %v668 = vstv %s667
        %v669 = vmul.f32 %v512, %v668
        %v670 = vmul.f32 %v513, %v668
        %v671 = vadd.f32 %v665, %v669
        %v672 = vadd.f32 %v666, %v670
        %s673 = sld [smem:[#allocation3 + $0x14]]
        %v674 = vstv %s673
        %v675 = vmul.f32 %v531, %v674
        %v676 = vmul.f32 %v532, %v674
        %v677 = vadd.f32 %v671, %v675
        %v678 = vadd.f32 %v672, %v676
        %681 = vrot.lane.b32.xlu0 %v677, 16
        %v682 = vpop.permute.xlu0 %681
        %683 = vrot.lane.b32.xlu0 %v678, 16
        %v684 = vpop.permute.xlu0 %683
        %vm685 = vcmask 130048
        %v686 = vsel %vm685, %v682, %v684
        %v689 = vsel %vm685, 0.0, %v682
        %v690 = vadd.f32 %v637, %v689
        %v691 = vadd.f32 %v638, %v686
        %s692 = sld [smem:[#allocation3 + $0x15]]
        %v693 = vstv %s692
        %v694 = vmul.f32 %v429, %v693
        %v695 = vmul.f32 %v430, %v693
        %s696 = sld [smem:[#allocation3 + $0x16]]
        %v697 = vstv %s696
        %v698 = vmul.f32 %v448, %v697
        %v699 = vmul.f32 %v449, %v697
        %v700 = vadd.f32 %v694, %v698
        %v701 = vadd.f32 %v695, %v699
        %s702 = sld [smem:[#allocation3 + $0x17]]
        %v703 = vstv %s702
        %v704 = vmul.f32 %v466, %v703
        %v705 = vmul.f32 %v467, %v703
        %v706 = vadd.f32 %v700, %v704
        %v707 = vadd.f32 %v701, %v705
        %s708 = sld [smem:[#allocation3 + $0x18]]
        %v709 = vstv %s708
        %v710 = vmul.f32 %v474, %v709
        %v711 = vmul.f32 %v475, %v709
        %v712 = vadd.f32 %v706, %v710
        %v713 = vadd.f32 %v707, %v711
        %s714 = sld [smem:[#allocation3 + $0x19]]
        %v715 = vstv %s714
        %v716 = vmul.f32 %v493, %v715
        %v717 = vmul.f32 %v494, %v715
        %v718 = vadd.f32 %v712, %v716
        %v719 = vadd.f32 %v713, %v717
        %s720 = sld [smem:[#allocation3 + $0x1a]]
        %v721 = vstv %s720
        %v722 = vmul.f32 %v512, %v721
        %v723 = vmul.f32 %v513, %v721
        %v724 = vadd.f32 %v718, %v722
        %v725 = vadd.f32 %v719, %v723
        %s726 = sld [smem:[#allocation3 + $0x1b]]
        %v727 = vstv %s726
        %v728 = vmul.f32 %v531, %v727
        %v729 = vmul.f32 %v532, %v727
        %v730 = vadd.f32 %v724, %v728
        %v731 = vadd.f32 %v725, %v729
        %v732 = vadd.f32 %v690, %v730
        %v733 = vadd.f32 %v691, %v731
        %s734 = sld [smem:[#allocation3 + $0x1c]]
        %v735 = vstv %s734
        %v736 = vmul.f32 %v429, %v735
        %v737 = vmul.f32 %v430, %v735
        %s738 = sld [smem:[#allocation3 + $0x1d]]
        %v739 = vstv %s738
        %v740 = vmul.f32 %v448, %v739
        %v741 = vmul.f32 %v449, %v739
        %v742 = vadd.f32 %v736, %v740
        %v743 = vadd.f32 %v737, %v741
        %s744 = sld [smem:[#allocation3 + $0x1e]]
        %v745 = vstv %s744
        %v746 = vmul.f32 %v466, %v745
        %v747 = vmul.f32 %v467, %v745
        %v748 = vadd.f32 %v742, %v746
        %v749 = vadd.f32 %v743, %v747
        %s750 = sld [smem:[#allocation3 + $0x1f]]
        %v751 = vstv %s750
        %v752 = vmul.f32 %v474, %v751
        %v753 = vmul.f32 %v475, %v751
        %v754 = vadd.f32 %v748, %v752
        %v755 = vadd.f32 %v749, %v753
        %s756 = sld [smem:[#allocation3 + $0x20]]
        %v757 = vstv %s756
        %v758 = vmul.f32 %v493, %v757
        %v759 = vmul.f32 %v494, %v757
        %v760 = vadd.f32 %v754, %v758
        %v761 = vadd.f32 %v755, %v759
        %s762 = sld [smem:[#allocation3 + $0x21]]
        %v763 = vstv %s762
        %v764 = vmul.f32 %v512, %v763
        %v765 = vmul.f32 %v513, %v763
        %v766 = vadd.f32 %v760, %v764
        %v767 = vadd.f32 %v761, %v765
        %s768 = sld [smem:[#allocation3 + $0x22]]
        %v769 = vstv %s768
        %v770 = vmul.f32 %v531, %v769
        %v771 = vmul.f32 %v532, %v769
        %v772 = vadd.f32 %v766, %v770
        %v773 = vadd.f32 %v767, %v771
        %776 = vrot.lane.b32.xlu0 %v772, 112
        %v777 = vpop.permute.xlu0 %776
        %778 = vrot.lane.b32.xlu0 %v773, 112
        %v779 = vpop.permute.xlu0 %778
        %vm780 = vcmask 916480
        %v781 = vsel %vm780, %v777, %v779
        %v784 = vsel %vm780, %v779, 0.0
        %v785 = vadd.f32 %v732, %v781
        %v786 = vadd.f32 %v733, %v784
        %s787 = sld [smem:[#allocation3 + $0x23]]
        %v788 = vstv %s787
        %v789 = vmul.f32 %v429, %v788
        %v790 = vmul.f32 %v430, %v788
        %s791 = sld [smem:[#allocation3 + $0x24]]
        %v792 = vstv %s791
        %v793 = vmul.f32 %v448, %v792
        %v794 = vmul.f32 %v449, %v792
        %v795 = vadd.f32 %v789, %v793
        %v796 = vadd.f32 %v790, %v794
        %s797 = sld [smem:[#allocation3 + $0x25]]
        %v798 = vstv %s797
        %v799 = vmul.f32 %v466, %v798
        %v800 = vmul.f32 %v467, %v798
        %v801 = vadd.f32 %v795, %v799
        %v802 = vadd.f32 %v796, %v800
        %s803 = sld [smem:[#allocation3 + $0x26]]
        %v804 = vstv %s803
        %v805 = vmul.f32 %v474, %v804
        %v806 = vmul.f32 %v475, %v804
        %v807 = vadd.f32 %v801, %v805
        %v808 = vadd.f32 %v802, %v806
        %s809 = sld [smem:[#allocation3 + $0x27]]
        %v810 = vstv %s809
        %v811 = vmul.f32 %v493, %v810
        %v812 = vmul.f32 %v494, %v810
        %v813 = vadd.f32 %v807, %v811
        %v814 = vadd.f32 %v808, %v812
        %s815 = sld [smem:[#allocation3 + $0x28]]
        %v816 = vstv %s815
        %v817 = vmul.f32 %v512, %v816
        %v818 = vmul.f32 %v513, %v816
        %v819 = vadd.f32 %v813, %v817
        %v820 = vadd.f32 %v814, %v818
        %s821 = sld [smem:[#allocation3 + $0x29]]
        %v822 = vstv %s821
        %v823 = vmul.f32 %v531, %v822
        %v824 = vmul.f32 %v532, %v822
        %v825 = vadd.f32 %v819, %v823
        %v826 = vadd.f32 %v820, %v824
        %829 = vrot.lane.b32.xlu0 %v825, 96
        %v830 = vpop.permute.xlu0 %829
        %831 = vrot.lane.b32.xlu0 %v826, 96
        %v832 = vpop.permute.xlu0 %831
        %vm833 = vcmask 785408
        %v834 = vsel %vm833, %v830, %v832
        %v837 = vsel %vm833, %v832, 0.0
        %v838 = vadd.f32 %v785, %v834
        %v839 = vadd.f32 %v786, %v837
        %s840 = sld [smem:[#allocation3 + $0x2a]]
        %v841 = vstv %s840
        %v842 = vmul.f32 %v429, %v841
        %v843 = vmul.f32 %v430, %v841
        %s844 = sld [smem:[#allocation3 + $0x2b]]
        %v845 = vstv %s844
        %v846 = vmul.f32 %v448, %v845
        %v847 = vmul.f32 %v449, %v845
        %v848 = vadd.f32 %v842, %v846
        %v849 = vadd.f32 %v843, %v847
        %s850 = sld [smem:[#allocation3 + $0x2c]]
        %v851 = vstv %s850
        %v852 = vmul.f32 %v466, %v851
        %v853 = vmul.f32 %v467, %v851
        %v854 = vadd.f32 %v848, %v852
        %v855 = vadd.f32 %v849, %v853
        %s856 = sld [smem:[#allocation3 + $0x2d]]
        %v857 = vstv %s856
        %v858 = vmul.f32 %v474, %v857
        %v859 = vmul.f32 %v475, %v857
        %v860 = vadd.f32 %v854, %v858
        %v861 = vadd.f32 %v855, %v859
        %s862 = sld [smem:[#allocation3 + $0x2e]]
        %v863 = vstv %s862
        %v864 = vmul.f32 %v493, %v863
        %v865 = vmul.f32 %v494, %v863
        %v866 = vadd.f32 %v860, %v864
        %v867 = vadd.f32 %v861, %v865
        %s868 = sld [smem:[#allocation3 + $0x2f]]
        %v869 = vstv %s868
        %v870 = vmul.f32 %v512, %v869
        %v871 = vmul.f32 %v513, %v869
        %v872 = vadd.f32 %v866, %v870
        %v873 = vadd.f32 %v867, %v871
        %s874 = sld [smem:[#allocation3 + $0x30]]
        %v875 = vstv %s874
        %v876 = vmul.f32 %v531, %v875
        %v877 = vmul.f32 %v532, %v875
        %v878 = vadd.f32 %v872, %v876
        %v879 = vadd.f32 %v873, %v877
        %882 = vrot.lane.b32.xlu0 %v878, 80
        %v883 = vpop.permute.xlu0 %882
        %884 = vrot.lane.b32.xlu0 %v879, 80
        %v885 = vpop.permute.xlu0 %884
        %vm886 = vcmask 654336
        %v887 = vsel %vm886, %v883, %v885
        %v890 = vsel %vm886, %v885, 0.0
        %v891 = vadd.f32 %v838, %v887
        %v892 = vadd.f32 %v839, %v890
        %v893 = vxor.u32 %v891, 2147483648
        %v894 = vxor.u32 %v892, 2147483648
        %v895 = vmul.f32 %v893, 1.442695
        %v896 = vpow.pop %v895
        %v897 = vmul.f32 %v894, 1.442695
        %v898 = vpow.pop %v897
        %v899 = vadd.f32 %v896, 1.0
        %v900 = vadd.f32 %v898, 1.0
        %v901 = vrcp.pop %v899
        %v902 = vmul.f32 1.0, %v901
        %v903 = vrcp.pop %v900
        %v904 = vmul.f32 1.0, %v903
        %v905 = vlaneseq
        %v906 = vshrl.u32 %v905, 7
        %v907 = vsub.s32 0, %v906
        %v908 = vrot.slane %v902, %v907
        %v909 = vlaneseq
        %v910 = vshrl.u32 %v909, 7
        %v911 = vsub.s32 0, %v910
        %v912 = vrot.slane %v904, %v911
        %v913 = vmul.f32 %v274, %v908
        %v914 = vmul.f32 %v275, %v912
        %v915 = vmul.f32 %v276, %v908
        %v916 = vmul.f32 %v277, %v912
        %917 = vst [vmem:[%s264] sm:$0xff] %v913
        %918 = vst [vmem:[%s264 + $0x8] sm:$0xff] %v914
        %919 = vst [vmem:[%s264 + $0x10] sm:$0xff] %v915
        %920 = vst [vmem:[%s264 + $0x18] sm:$0xff] %v916
        %s921 = sand.u32 %s152, 1
        %s922 = scalar_lea.sflag [#allocation6], %s921
        %s923 = sand.u32 %s152, 1
        %s924 = smul.addr %s923, 32
        %s925 = scalar_lea.vmem [#allocation7], %s924
        // Predicated region
        $region45: #{tpu_custom_call.1} parent=39 // pred_check
          %p926 = pneg %p162
        $region46: #{tpu_custom_call.1} parent=39 // pred_check_branch
          %928 = sbr.rel (%p926) target = $region48
        $region47: #{tpu_custom_call.1} parent=39 // pred_region
          %s930 = ssub.s32 512, 512
          %931 = vsyncadd %s922, %s930
          %s932 = smul.addr %s29, 4
          %s933 = smul.addr %s932, 128
          %s934 = scalar_lea.hbm %s6, %s933
          %s935 = sshll.u32 %s925, 4
          %s936 = int_to_ptr.vmem [resolvable:$true] %s935
          %941 = dma.vmem_to_hbm [thread:$0]  %s936, 512, %s934, %s922, 256, 256, 16
        $region48: #{tpu_custom_call.1} parent=39 // pred_fallthru
          _
      $region40: #{tpu_custom_call.1} parent=5 // pred_fallthru
        _
      %p942 = scmp.le.s32.totalorder 2, %s24
      // Predicated region
      $region49: #{tpu_custom_call.1} parent=5 // pred_check
        %p943 = pneg %p942
      $region50: #{tpu_custom_call.1} parent=5 // pred_check_branch
        %945 = sbr.rel (%p943) target = $region52
      $region51: #{tpu_custom_call.1} parent=5 // pred_region
        %s946 = ssub.s32 %s24, 2
        // Predicated region
        $region53: #{tpu_custom_call.1} parent=51 // pred_check
          %p947 = pneg %p168
        $region54: #{tpu_custom_call.1} parent=51 // pred_check_branch
          %949 = sbr.rel (%p947) target = $region56
        $region55: #{tpu_custom_call.1} parent=51 // pred_region
          %s950 = sand.u32 %s153, 1
          %s951 = scalar_lea.sflag [#allocation6], %s950
          %s952 = sand.u32 %s153, 1
          %s953 = smul.addr %s952, 32
          %s954 = scalar_lea.vmem [#allocation7], %s953
          %955 = dma.done %s951, 512
        $region56: #{tpu_custom_call.1} parent=51 // pred_fallthru
          _
      $region52: #{tpu_custom_call.1} parent=5 // pred_fallthru
        _
    $region6: #{tpu_custom_call.1} parent=1 // loop_footer
      %s28 = sadd.s32 1, %s24
    $region7: #{tpu_custom_call.1} parent=1 // loop_footer_branch
      %23 = sbr.rel target = $region3
    $region8: #{tpu_custom_call.1} parent=1 // loop_exit
      _
    %956 = vsyncpa [#allocation5], 1
    %s957 = scalar_lea.sflag [#allocation5], 1
    %958 = vsyncpa %s957, 1
    %959 = vsyncpa [#allocation6], 1
    %s960 = scalar_lea.sflag [#allocation6], 1
    %961 = vsyncpa %s960, 1

</llo_original>
